<compile_context>
chip_gen: v6e
topology: v6e:2x2x1
jax: 0.10.0
libtpu: 0.0.40
codegen_flags: <defaults>
</compile_context>

<pallas_src>
import math
import jax
import jax.numpy as jnp
from jax.experimental import pallas as pl
from jax.experimental.pallas import tpu as pltpu

D = 128           # esm embedding dim (stand-in for 1280 in the reference)
H1, H2 = 512, 64  # MLP hidden sizes (same as reference)


def _mlp_attn_kernel(sub_ref, cyc_ref,
                     wq_ref, wkv_ref,
                     w1_ref, b1_ref, w2_ref, b2_ref, w3_ref, b3_ref,
                     out_ref):
    BT, S, _ = sub_ref.shape          # batch tile, peptide length
    C = cyc_ref.shape[1]              # cyclase length

    sub_f32 = sub_ref[...].astype(jnp.float32)   # kept f32 for the sequence mean
    sub_bf = sub_ref[...].astype(jnp.bfloat16)
    cyc_bf = cyc_ref[...].astype(jnp.bfloat16)

    # Cross-attention projections as collapsed 2-D matmuls (weights shared across
    # batch; Wk and Wv fused into one [D, 2D] weight). bf16 operands, f32 accum.
    q2 = jnp.dot(sub_bf.reshape(BT * S, D), wq_ref[...],
                 preferred_element_type=jnp.float32)            # [BT*S, D]
    kv2 = jnp.dot(cyc_bf.reshape(BT * C, D), wkv_ref[...],
                  preferred_element_type=jnp.float32)           # [BT*C, 2D]
    q = q2.reshape(BT, S, D)
    k = kv2[:, :D].reshape(BT, C, D)
    v = kv2[:, D:].reshape(BT, C, D)

    # attn_scores = q @ k^T, scaled by sqrt(d).
    scores = jnp.einsum('bsd,bcd->bsc',
                        q.astype(jnp.bfloat16), k.astype(jnp.bfloat16),
                        preferred_element_type=jnp.float32)     # [BT, S, C]
    scaled = scores * (1.0 / math.sqrt(D))

    # NOTE: the reference applies masked_fill to the *unscaled* scores tensor and
    # then softmaxes the *scaled* copy, so the attention mask has no effect on the
    # output. We reproduce that semantics exactly: softmax(scaled), mask unused.
    m = jnp.max(scaled, axis=-1, keepdims=True)
    e = jnp.exp(scaled - m)
    attn = e * pl.reciprocal(jnp.sum(e, axis=-1, keepdims=True), approx=True)

    x1 = jnp.einsum('bsc,bcd->bsd',
                    attn.astype(jnp.bfloat16), v.astype(jnp.bfloat16),
                    preferred_element_type=jnp.float32)         # [BT, S, D]

    x1_avg = jnp.mean(x1, axis=1)       # [BT, D]
    sub_avg = jnp.mean(sub_f32, axis=1)  # [BT, D]

    # MLP head. Concatenate([x1_avg, sub_avg]) @ W1 is replaced by splitting W1
    # (static slice on the ref view, D is sublane-aligned) -> no VMEM copy.
    w1a = w1_ref[:D, :]
    w1b = w1_ref[D:, :]
    h1 = (jnp.dot(x1_avg.astype(jnp.bfloat16), w1a,
                  preferred_element_type=jnp.float32)
          + jnp.dot(sub_avg.astype(jnp.bfloat16), w1b,
                    preferred_element_type=jnp.float32)
          + b1_ref[...])
    h1 = jnp.maximum(h1, 0.0)

    h2 = jnp.maximum(
        jnp.dot(h1.astype(jnp.bfloat16), w2_ref[...],
                preferred_element_type=jnp.float32) + b2_ref[...], 0.0)

    # Final Linear(64, 1): N=1 would waste the MXU -> VPU multiply + lane reduce.
    logit = jnp.sum(h2 * w3_ref[...], axis=-1, keepdims=True) + b3_ref[...]
    out_ref[...] = jax.nn.sigmoid(logit)                        # [BT, 1]


def mlp_with_attention(cyclase, substrate, cyclase_mask, substrate_mask, params,
                       *, batch_tile=8):
    """Forward pass of MLPWithAttention. Returns [B, 1] float32."""
    # Masks are accepted for interface fidelity but (per the reference code's
    # semantics) do not influence the output — see NOTE in the kernel.
    del cyclase_mask, substrate_mask
    B, S, _ = substrate.shape
    C = cyclase.shape[1]
    assert B % batch_tile == 0, "demo requires batch divisible by batch_tile"
    grid = (B // batch_tile,)

    # Weights in bf16 (halves weight HBM->VMEM bytes); tiny bias/final-layer
    # params stay f32 for the elementwise path.
    wq = params['wq'].astype(jnp.bfloat16)                                   # [D, D]
    wkv = jnp.concatenate([params['wk'], params['wv']], axis=1).astype(jnp.bfloat16)  # [D, 2D]
    w1 = params['w1'].astype(jnp.bfloat16)                                   # [2D, H1]
    w2 = params['w2'].astype(jnp.bfloat16)                                   # [H1, H2]
    w3 = params['w3'].reshape(1, H2).astype(jnp.float32)                     # [1, H2]
    b1, b2, b3 = params['b1'], params['b2'], params['b3']

    args = (substrate, cyclase, wq, wkv, w1, b1, w2, b2, w3, b3)

    const2d = lambda b: (0, 0)   # weights: same block every grid step -> VMEM-resident
    in_specs = [
        pl.BlockSpec((batch_tile, S, D), lambda b: (b, 0, 0)),   # substrate tile
        pl.BlockSpec((batch_tile, C, D), lambda b: (b, 0, 0)),   # cyclase tile
        pl.BlockSpec((D, D), const2d),          # wq
        pl.BlockSpec((D, 2 * D), const2d),      # wkv
        pl.BlockSpec((2 * D, H1), const2d),     # w1
        pl.BlockSpec((1, H1), const2d),         # b1
        pl.BlockSpec((H1, H2), const2d),        # w2
        pl.BlockSpec((1, H2), const2d),         # b2
        pl.BlockSpec((1, H2), const2d),         # w3 (row vector)
        pl.BlockSpec((1, 1), const2d),          # b3
    ]
    out_specs = pl.BlockSpec((batch_tile, 1), lambda b: (b, 0))

    return pl.pallas_call(
        _mlp_attn_kernel,
        out_shape=jax.ShapeDtypeStruct((B, 1), jnp.float32),
        grid=grid,
        in_specs=in_specs,
        out_specs=out_specs,
        compiler_params=pltpu.CompilerParams(
            dimension_semantics=("parallel",),
            vmem_limit_bytes=32 * 1024 * 1024,  # above v5e's 16 MiB scoped default
        ),
    )(*args)


def init_params(key):
    ks = jax.random.split(key, 9)

    def linear(kw, kb, fan_in, fan_out):
        # PyTorch Linear default init: U(-1/sqrt(fan_in), 1/sqrt(fan_in)).
        bound = 1.0 / math.sqrt(fan_in)
        w = jax.random.uniform(kw, (fan_in, fan_out), jnp.float32, -bound, bound)
        b = jax.random.uniform(kb, (1, fan_out), jnp.float32, -bound, bound)
        return w, b

    # CrossAttention weights: torch.rand -> U[0, 1)
    wq = jax.random.uniform(ks[0], (D, D), jnp.float32)
    wk = jax.random.uniform(ks[1], (D, D), jnp.float32)
    wv = jax.random.uniform(ks[2], (D, D), jnp.float32)
    w1, b1 = linear(ks[3], ks[4], 2 * D, H1)
    w2, b2 = linear(ks[5], ks[6], H1, H2)
    w3, b3 = linear(ks[7], ks[8], H2, 1)
    return dict(wq=wq, wk=wk, wv=wv, w1=w1, b1=b1, w2=w2, b2=b2, w3=w3, b3=b3)


if __name__ == "__main__":
    key = jax.random.PRNGKey(0)
    k_par, k_cyc, k_sub = jax.random.split(key, 3)

    # Small demo shapes; batch 16 with batch_tile 8 -> a 2-step "parallel" grid.
    B, LEN_CYC, LEN_SUB = 16, 16, 8
    params = init_params(k_par)

    cyclase = jax.random.normal(k_cyc, (B, LEN_CYC, D), jnp.float32) * 0.1
    substrate = jax.random.normal(k_sub, (B, LEN_SUB, D), jnp.float32) * 0.1
    cyclase_mask = jnp.ones((B, LEN_CYC), jnp.float32)
    substrate_mask = jnp.ones((B, LEN_SUB), jnp.float32)

    out = mlp_with_attention(cyclase, substrate, cyclase_mask, substrate_mask, params)
    out = jax.block_until_ready(out)
    assert out.shape == (B, 1) and out.dtype == jnp.float32
    assert bool(jnp.all(jnp.isfinite(out)))
    print("KERNEL_OK")
</pallas_src>

<mosaic_0001>
module attributes {stable_mosaic.version = 11 : i64} {
  func.func @_mlp_attn_kernel(%arg0: i32, %arg1: memref<8x8x128xf32, #tpu.memory_space<vmem>>, %arg2: memref<8x16x128xf32, #tpu.memory_space<vmem>>, %arg3: memref<128x128xbf16, #tpu.memory_space<vmem>>, %arg4: memref<128x256xbf16, #tpu.memory_space<vmem>>, %arg5: memref<256x512xbf16, #tpu.memory_space<vmem>>, %arg6: memref<1x512xf32, #tpu.memory_space<vmem>>, %arg7: memref<512x64xbf16, #tpu.memory_space<vmem>>, %arg8: memref<1x64xf32, #tpu.memory_space<vmem>>, %arg9: memref<1x64xf32, #tpu.memory_space<vmem>>, %arg10: memref<1x1xf32, #tpu.memory_space<vmem>>, %arg11: memref<8x1xf32, #tpu.memory_space<vmem>>) attributes {dimension_semantics = [#tpu.dimension_semantics<parallel>], iteration_bounds = array<i64: 2>, scalar_prefetch = 0 : i64, scratch_operands = 0 : i64, tpu.core_type = #tpu.core_type<tc>, window_params = [{transform_indices = @transform_0, window_bounds = array<i64: 8, 8, 128>}, {transform_indices = @transform_1, window_bounds = array<i64: 8, 16, 128>}, {pipeline_mode = #tpu.pipeline_mode<synchronous>, transform_indices = @transform_2, window_bounds = array<i64: 128, 128>}, {pipeline_mode = #tpu.pipeline_mode<synchronous>, transform_indices = @transform_3, window_bounds = array<i64: 128, 256>}, {pipeline_mode = #tpu.pipeline_mode<synchronous>, transform_indices = @transform_4, window_bounds = array<i64: 256, 512>}, {pipeline_mode = #tpu.pipeline_mode<synchronous>, transform_indices = @transform_5, window_bounds = array<i64: 1, 512>}, {pipeline_mode = #tpu.pipeline_mode<synchronous>, transform_indices = @transform_6, window_bounds = array<i64: 512, 64>}, {pipeline_mode = #tpu.pipeline_mode<synchronous>, transform_indices = @transform_7, window_bounds = array<i64: 1, 64>}, {pipeline_mode = #tpu.pipeline_mode<synchronous>, transform_indices = @transform_8, window_bounds = array<i64: 1, 64>}, {pipeline_mode = #tpu.pipeline_mode<synchronous>, transform_indices = @transform_9, window_bounds = array<i64: 1, 1>}, {transform_indices = @transform_10, window_bounds = array<i64: 8, 1>}]} {
    %c0 = arith.constant 0 : index
    %c0_0 = arith.constant 0 : index
    %c0_1 = arith.constant 0 : index
    %0 = vector.load %arg1[%c0, %c0_0, %c0_1] : memref<8x8x128xf32, #tpu.memory_space<vmem>>, vector<8x8x128xf32>
    %c0_2 = arith.constant 0 : index
    %c0_3 = arith.constant 0 : index
    %c0_4 = arith.constant 0 : index
    %1 = vector.load %arg1[%c0_2, %c0_3, %c0_4] : memref<8x8x128xf32, #tpu.memory_space<vmem>>, vector<8x8x128xf32>
    %2 = arith.truncf %1 : vector<8x8x128xf32> to vector<8x8x128xbf16>
    %c0_5 = arith.constant 0 : index
    %c0_6 = arith.constant 0 : index
    %c0_7 = arith.constant 0 : index
    %3 = vector.load %arg2[%c0_5, %c0_6, %c0_7] : memref<8x16x128xf32, #tpu.memory_space<vmem>>, vector<8x16x128xf32>
    %4 = arith.truncf %3 : vector<8x16x128xf32> to vector<8x16x128xbf16>
    %5 = vector.shape_cast %2 : vector<8x8x128xbf16> to vector<64x128xbf16>
    %c0_8 = arith.constant 0 : index
    %c0_9 = arith.constant 0 : index
    %6 = vector.load %arg3[%c0_8, %c0_9] : memref<128x128xbf16, #tpu.memory_space<vmem>>, vector<128x128xbf16>
    %cst = arith.constant dense<0.000000e+00> : vector<64x128xf32>
    %7 = tpu.matmul %5, %6, %cst {dimension_numbers = #tpu.dot_dimension_numbers<[1], [0], [0], [1], [0, 0, 1, 1], [], []>} : vector<64x128xbf16>, vector<128x128xbf16>, vector<64x128xf32> -> vector<64x128xf32>
    %8 = vector.shape_cast %4 : vector<8x16x128xbf16> to vector<128x128xbf16>
    %c0_10 = arith.constant 0 : index
    %c0_11 = arith.constant 0 : index
    %9 = vector.load %arg4[%c0_10, %c0_11] : memref<128x256xbf16, #tpu.memory_space<vmem>>, vector<128x256xbf16>
    %cst_12 = arith.constant dense<0.000000e+00> : vector<128x256xf32>
    %10 = tpu.matmul %8, %9, %cst_12 {dimension_numbers = #tpu.dot_dimension_numbers<[1], [0], [0], [1], [0, 0, 1, 1], [], []>} : vector<128x128xbf16>, vector<128x256xbf16>, vector<128x256xf32> -> vector<128x256xf32>
    %11 = vector.shape_cast %7 : vector<64x128xf32> to vector<8x8x128xf32>
    %12 = vector.extract_strided_slice %10 {offsets = [0, 0], sizes = [128, 128], strides = [1, 1]} : vector<128x256xf32> to vector<128x128xf32>
    %13 = vector.shape_cast %12 : vector<128x128xf32> to vector<8x16x128xf32>
    %14 = vector.extract_strided_slice %10 {offsets = [0, 128], sizes = [128, 128], strides = [1, 1]} : vector<128x256xf32> to vector<128x128xf32>
    %15 = vector.shape_cast %14 : vector<128x128xf32> to vector<8x16x128xf32>
    %16 = arith.truncf %11 : vector<8x8x128xf32> to vector<8x8x128xbf16>
    %17 = arith.truncf %13 : vector<8x16x128xf32> to vector<8x16x128xbf16>
    "tpu.trace_start"() <{level = 10 : i32, message = "bsd,bcd->bsc"}> : () -> ()
    %cst_13 = arith.constant dense<0.000000e+00> : vector<8x8x16xf32>
    %18 = tpu.matmul %16, %17, %cst_13 {dimension_numbers = #tpu.dot_dimension_numbers<[2], [2], [1], [1], [0, 0, 0, 1, 1, 1], [0], [0]>} : vector<8x8x128xbf16>, vector<8x16x128xbf16>, vector<8x8x16xf32> -> vector<8x8x16xf32>
    "tpu.trace_stop"() : () -> ()
    %cst_14 = arith.constant 0.0883883461 : f32
    %19 = vector.broadcast %cst_14 : f32 to vector<8x8x16xf32>
    %20 = arith.mulf %18, %19 : vector<8x8x16xf32>
    %cst_15 = arith.constant dense<0xFF800000> : vector<8x8xf32>
    %21 = vector.multi_reduction <maximumf>, %20, %cst_15 [2] : vector<8x8x16xf32> to vector<8x8xf32>
    %22 = vector.shape_cast %21 : vector<8x8xf32> to vector<8x8x1xf32>
    %23 = vector.broadcast %22 : vector<8x8x1xf32> to vector<8x8x16xf32>
    %24 = arith.subf %20, %23 : vector<8x8x16xf32>
    %25 = math.exp %24 : vector<8x8x16xf32>
    %cst_16 = arith.constant dense<0.000000e+00> : vector<8x8xf32>
    %26 = vector.multi_reduction <add>, %25, %cst_16 [2] : vector<8x8x16xf32> to vector<8x8xf32>
    %27 = vector.shape_cast %26 : vector<8x8xf32> to vector<8x8x1xf32>
    %28 = tpu.reciprocal %27 {approx = true} : vector<8x8x1xf32> -> vector<8x8x1xf32>
    %29 = vector.broadcast %28 : vector<8x8x1xf32> to vector<8x8x16xf32>
    %30 = arith.mulf %25, %29 : vector<8x8x16xf32>
    %31 = arith.truncf %30 : vector<8x8x16xf32> to vector<8x8x16xbf16>
    %32 = arith.truncf %15 : vector<8x16x128xf32> to vector<8x16x128xbf16>
    "tpu.trace_start"() <{level = 10 : i32, message = "bsc,bcd->bsd"}> : () -> ()
    %cst_17 = arith.constant dense<0.000000e+00> : vector<8x8x128xf32>
    %33 = tpu.matmul %31, %32, %cst_17 {dimension_numbers = #tpu.dot_dimension_numbers<[2], [1], [1], [2], [0, 0, 0, 1, 1, 2], [0], [0]>} : vector<8x8x16xbf16>, vector<8x16x128xbf16>, vector<8x8x128xf32> -> vector<8x8x128xf32>
    "tpu.trace_stop"() : () -> ()
    %cst_18 = arith.constant dense<0.000000e+00> : vector<8x128xf32>
    %34 = vector.multi_reduction <add>, %33, %cst_18 [1] : vector<8x8x128xf32> to vector<8x128xf32>
    %cst_19 = arith.constant 8.000000e+00 : f32
    %35 = vector.broadcast %cst_19 : f32 to vector<8x128xf32>
    %36 = arith.divf %34, %35 : vector<8x128xf32>
    %cst_20 = arith.constant dense<0.000000e+00> : vector<8x128xf32>
    %37 = vector.multi_reduction <add>, %0, %cst_20 [1] : vector<8x8x128xf32> to vector<8x128xf32>
    %cst_21 = arith.constant 8.000000e+00 : f32
    %38 = vector.broadcast %cst_21 : f32 to vector<8x128xf32>
    %39 = arith.divf %37, %38 : vector<8x128xf32>
    %c0_22 = arith.constant 0 : index
    %c0_23 = arith.constant 0 : index
    %40 = vector.load %arg5[%c0_22, %c0_23] : memref<256x512xbf16, #tpu.memory_space<vmem>>, vector<128x512xbf16>
    %c128 = arith.constant 128 : index
    %c0_24 = arith.constant 0 : index
    %41 = vector.load %arg5[%c128, %c0_24] : memref<256x512xbf16, #tpu.memory_space<vmem>>, vector<128x512xbf16>
    %42 = arith.truncf %36 : vector<8x128xf32> to vector<8x128xbf16>
    %cst_25 = arith.constant dense<0.000000e+00> : vector<8x512xf32>
    %43 = tpu.matmul %42, %40, %cst_25 {dimension_numbers = #tpu.dot_dimension_numbers<[1], [0], [0], [1], [0, 0, 1, 1], [], []>} : vector<8x128xbf16>, vector<128x512xbf16>, vector<8x512xf32> -> vector<8x512xf32>
    %44 = arith.truncf %39 : vector<8x128xf32> to vector<8x128xbf16>
    %cst_26 = arith.constant dense<0.000000e+00> : vector<8x512xf32>
    %45 = tpu.matmul %44, %41, %cst_26 {dimension_numbers = #tpu.dot_dimension_numbers<[1], [0], [0], [1], [0, 0, 1, 1], [], []>} : vector<8x128xbf16>, vector<128x512xbf16>, vector<8x512xf32> -> vector<8x512xf32>
    %46 = arith.addf %43, %45 : vector<8x512xf32>
    %c0_27 = arith.constant 0 : index
    %c0_28 = arith.constant 0 : index
    %47 = vector.load %arg6[%c0_27, %c0_28] : memref<1x512xf32, #tpu.memory_space<vmem>>, vector<1x512xf32>
    %48 = vector.broadcast %47 : vector<1x512xf32> to vector<8x512xf32>
    %49 = arith.addf %46, %48 : vector<8x512xf32>
    %cst_29 = arith.constant 0.000000e+00 : f32
    %50 = vector.broadcast %cst_29 : f32 to vector<8x512xf32>
    %51 = arith.maximumf %49, %50 : vector<8x512xf32>
    %52 = arith.truncf %51 : vector<8x512xf32> to vector<8x512xbf16>
    %c0_30 = arith.constant 0 : index
    %c0_31 = arith.constant 0 : index
    %53 = vector.load %arg7[%c0_30, %c0_31] : memref<512x64xbf16, #tpu.memory_space<vmem>>, vector<512x64xbf16>
    %cst_32 = arith.constant dense<0.000000e+00> : vector<8x64xf32>
    %54 = tpu.matmul %52, %53, %cst_32 {dimension_numbers = #tpu.dot_dimension_numbers<[1], [0], [0], [1], [0, 0, 1, 1], [], []>} : vector<8x512xbf16>, vector<512x64xbf16>, vector<8x64xf32> -> vector<8x64xf32>
    %c0_33 = arith.constant 0 : index
    %c0_34 = arith.constant 0 : index
    %55 = vector.load %arg8[%c0_33, %c0_34] : memref<1x64xf32, #tpu.memory_space<vmem>>, vector<1x64xf32>
    %56 = vector.broadcast %55 : vector<1x64xf32> to vector<8x64xf32>
    %57 = arith.addf %54, %56 : vector<8x64xf32>
    %cst_35 = arith.constant 0.000000e+00 : f32
    %58 = vector.broadcast %cst_35 : f32 to vector<8x64xf32>
    %59 = arith.maximumf %57, %58 : vector<8x64xf32>
    %c0_36 = arith.constant 0 : index
    %c0_37 = arith.constant 0 : index
    %60 = vector.load %arg9[%c0_36, %c0_37] : memref<1x64xf32, #tpu.memory_space<vmem>>, vector<1x64xf32>
    %61 = vector.broadcast %60 : vector<1x64xf32> to vector<8x64xf32>
    %62 = arith.mulf %59, %61 : vector<8x64xf32>
    %cst_38 = arith.constant dense<0.000000e+00> : vector<8xf32>
    %63 = vector.multi_reduction <add>, %62, %cst_38 [1] : vector<8x64xf32> to vector<8xf32>
    %64 = vector.shape_cast %63 : vector<8xf32> to vector<8x1xf32>
    %c0_39 = arith.constant 0 : index
    %c0_40 = arith.constant 0 : index
    %65 = vector.load %arg10[%c0_39, %c0_40] : memref<1x1xf32, #tpu.memory_space<vmem>>, vector<1x1xf32>
    %66 = vector.broadcast %65 : vector<1x1xf32> to vector<8x1xf32>
    %67 = arith.addf %64, %66 : vector<8x1xf32>
    %68 = arith.negf %67 : vector<8x1xf32>
    %69 = math.exp %68 : vector<8x1xf32>
    %cst_41 = arith.constant 1.000000e+00 : f32
    %70 = vector.broadcast %cst_41 : f32 to vector<8x1xf32>
    %71 = arith.addf %70, %69 : vector<8x1xf32>
    %72 = arith.divf %70, %71 : vector<8x1xf32>
    %c0_42 = arith.constant 0 : index
    %c0_43 = arith.constant 0 : index
    %73 = vector.load %arg11[%c0_42, %c0_43] : memref<8x1xf32, #tpu.memory_space<vmem>>, vector<8x1xf32>
    tpu.vector_store %arg11[%c0_42, %c0_43], %72 {strides = array<i32>} : memref<8x1xf32, #tpu.memory_space<vmem>>, vector<8x1xf32>,
    return
  }
  func.func @transform_0(%arg0: i32) -> (i32, i32, i32) {
    %c0_i32 = arith.constant 0 : i32
    %c0_i32_0 = arith.constant 0 : i32
    %c0_i32_1 = arith.constant 0 : i32
    return %arg0, %c0_i32, %c0_i32_0 : i32, i32, i32
  }
  func.func @transform_1(%arg0: i32) -> (i32, i32, i32) {
    %c0_i32 = arith.constant 0 : i32
    %c0_i32_0 = arith.constant 0 : i32
    %c0_i32_1 = arith.constant 0 : i32
    return %arg0, %c0_i32, %c0_i32_0 : i32, i32, i32
  }
  func.func @transform_2(%arg0: i32) -> (i32, i32) {
    %c0_i32 = arith.constant 0 : i32
    %c0_i32_0 = arith.constant 0 : i32
    %c0_i32_1 = arith.constant 0 : i32
    return %c0_i32, %c0_i32_0 : i32, i32
  }
  func.func @transform_3(%arg0: i32) -> (i32, i32) {
    %c0_i32 = arith.constant 0 : i32
    %c0_i32_0 = arith.constant 0 : i32
    %c0_i32_1 = arith.constant 0 : i32
    return %c0_i32, %c0_i32_0 : i32, i32
  }
  func.func @transform_4(%arg0: i32) -> (i32, i32) {
    %c0_i32 = arith.constant 0 : i32
    %c0_i32_0 = arith.constant 0 : i32
    %c0_i32_1 = arith.constant 0 : i32
    return %c0_i32, %c0_i32_0 : i32, i32
  }
  func.func @transform_5(%arg0: i32) -> (i32, i32) {
    %c0_i32 = arith.constant 0 : i32
    %c0_i32_0 = arith.constant 0 : i32
    %c0_i32_1 = arith.constant 0 : i32
    return %c0_i32, %c0_i32_0 : i32, i32
  }
  func.func @transform_6(%arg0: i32) -> (i32, i32) {
    %c0_i32 = arith.constant 0 : i32
    %c0_i32_0 = arith.constant 0 : i32
    %c0_i32_1 = arith.constant 0 : i32
    return %c0_i32, %c0_i32_0 : i32, i32
  }
  func.func @transform_7(%arg0: i32) -> (i32, i32) {
    %c0_i32 = arith.constant 0 : i32
    %c0_i32_0 = arith.constant 0 : i32
    %c0_i32_1 = arith.constant 0 : i32
    return %c0_i32, %c0_i32_0 : i32, i32
  }
  func.func @transform_8(%arg0: i32) -> (i32, i32) {
    %c0_i32 = arith.constant 0 : i32
    %c0_i32_0 = arith.constant 0 : i32
    %c0_i32_1 = arith.constant 0 : i32
    return %c0_i32, %c0_i32_0 : i32, i32
  }
  func.func @transform_9(%arg0: i32) -> (i32, i32) {
    %c0_i32 = arith.constant 0 : i32
    %c0_i32_0 = arith.constant 0 : i32
    %c0_i32_1 = arith.constant 0 : i32
    return %c0_i32, %c0_i32_0 : i32, i32
  }
  func.func @transform_10(%arg0: i32) -> (i32, i32) {
    %c0_i32 = arith.constant 0 : i32
    %c0_i32_0 = arith.constant 0 : i32
    return %arg0, %c0_i32 : i32, i32
  }
}

</mosaic_0001>

<llo_original>
// kernel: tpu_custom_call.1
$region0: #{tpu_custom_call.1}
  #allocation0 [shape = 'u32[]', space=smem, size = 0x4, offset = 0x4, fixed_abs, tag = 'smem constant byte address 0x4 - core index']
  #allocation1 [shape = 'u32[144,128]{1,0:T(1,128)}', space=vmem, size = 0x12000, scoped, tag = 'internal scratch']
  #allocation2 [shape = 'f32[1,1]{1,0:T(1,128)S(1)}', space=vmem, size = 0x200, scoped, tag = 'scoped memory for tpu_custom_call.1']
  %s0 = inlined_call_operand.vmem [shape: f32[16,8,128], index: 0, kind: input, shape index: {}]
  %s1 = inlined_call_operand.vmem [shape: f32[16,16,128], index: 1, kind: input, shape index: {}]
  %s2 = inlined_call_operand.hbm [shape: bf16[128,128], index: 2, kind: input, shape index: {}]
  %s3 = inlined_call_operand.hbm [shape: bf16[128,256], index: 3, kind: input, shape index: {}]
  %s4 = inlined_call_operand.hbm [shape: bf16[256,512], index: 4, kind: input, shape index: {}]
  %s5 = inlined_call_operand.vmem [shape: f32[1,512], index: 5, kind: input, shape index: {}]
  %s6 = inlined_call_operand.vmem [shape: bf16[512,64], index: 6, kind: input, shape index: {}]
  %s7 = inlined_call_operand.vmem [shape: f32[1,64], index: 7, kind: input, shape index: {}]
  %s8 = inlined_call_operand.vmem [shape: f32[1,64], index: 8, kind: input, shape index: {}]
  %s9 = inlined_call_operand.<no memory space> [shape: f32[1,1], index: 9, kind: input, shape index: {}]
  %s10 = inlined_call_operand.vmem [shape: f32[16,1], index: 10, kind: output, shape index: {}]
  %s11 = sld [smem:[#allocation0]]
  $region85: #{tpu_custom_call.1} parent=0
    _
  %s13 = ssub.s32 1, %s11
  %s14 = scalar_select 0, %s13, %s11
  %v15 = vstv %s9
  %16 = vst [vmem:[#allocation2] sm:$0x1] %v15
  $region1: #{tpu_custom_call.1} parent=0
    #allocation3 [shape = 'u8[32768]{0}', space=vmem, size = 0x8000, scoped, tag = 'input window, operand 2, single buffered']
    #allocation4 [shape = 's32[2]{0}', space=sflag, size = 0x8, scoped, tag = 'scoped memory for tpu_custom_call.1']
    #allocation5 [shape = 'u8[65536]{0}', space=vmem, size = 0x10000, scoped, tag = 'input window, operand 3, single buffered']
    #allocation6 [shape = 's32[1]{0}', space=sflag, size = 0x4, scoped, tag = 'scoped memory for tpu_custom_call.1']
    #allocation7 [shape = 'u8[262144]{0}', space=vmem, size = 0x40000, scoped, tag = 'input window, operand 4, single buffered']
    %17 = vsyncpa [#allocation4], 0
    %18 = vsyncpa [#allocation6], 0
    loop: start=0, step=1, limit=4
    $region2: #{tpu_custom_call.1} parent=1 // loop_pre_header
      _
    $region3: #{tpu_custom_call.1} parent=1 // loop_header
      %s20 = sphi 0, %s24
      %p21 = scmp.ge.s32.totalorder %s20, 4
      %s30 = sphi 0, %s32
      %s33 = sphi 0, %s30
      %s34 = sphi 0, %s33
      %s50 = sphi 0, %s34
      %s56 = sphi 0, %s58
      %s59 = sphi 0, %s56
      %s60 = sphi 0, %s59
      %s76 = sphi 0, %s60
      %s80 = sphi 0, %s80
      %s82 = sphi 0, %s80
      %s83 = sphi 0, %s82
      %s97 = sphi 0, %s83
      %s101 = sphi 0, %s101
      %s103 = sphi 0, %s101
      %s104 = sphi 0, %s103
      %s118 = sphi 0, %s104
      %s122 = sphi 0, %s122
      %s124 = sphi 0, %s122
      %s125 = sphi 0, %s124
      %s139 = sphi 0, %s125
      %s143 = sphi 0, %s143
      %s145 = sphi 0, %s143
      %s146 = sphi 0, %s145
      %s160 = sphi 0, %s146
      %s164 = sphi 0, %s164
      %s166 = sphi 0, %s164
      %s167 = sphi 0, %s166
      %s181 = sphi 0, %s167
      %s185 = sphi 0, %s185
      %s187 = sphi 0, %s185
      %s188 = sphi 0, %s187
      %s202 = sphi 0, %s188
      %s206 = sphi 0, %s206
      %s208 = sphi 0, %s206
      %s209 = sphi 0, %s208
      %s223 = sphi 0, %s209
      %s227 = sphi 0, %s227
      %s229 = sphi 0, %s227
      %s230 = sphi 0, %s229
      %s244 = sphi 0, %s230
      %s250 = sphi 0, %s252
      %s253 = sphi 0, %s250
      %s254 = sphi 0, %s253
      %s270 = sphi 0, %s254
    $region4: #{tpu_custom_call.1} parent=1 // loop_header_branch
      %23 = sbr.rel (%p21) target = $region8
    $region5: #{tpu_custom_call.1} parent=1 // loop_body
      %s25 = ssub.s32 %s20, 1
      %s26 = ssub.s32 %s20, 2
      %s27 = sadd.s32 %s20, 1
      %s28 = ssub.s32 %s20, %s27
      %p29 = scmp.eq.s32.totalorder %s28, 0
      %s31 = sadd.s32 %s30, 1
      %s32 = scalar_select %p29, %s30, %s31
      %p35 = pneg %p29
      %p36 = scmp.eq.s32.totalorder %s20, 1
      %p37 = por %p35, %p36
      %p38 = scmp.ne.s32.totalorder %s30, %s33
      %p39 = scmp.eq.s32.totalorder %s20, 0
      %p40 = por %p38, %p39
      %p41 = scmp.ne.s32.totalorder %s30, %s33
      %p42 = scmp.eq.s32.totalorder %s25, 1
      %p43 = por %p41, %p42
      %p44 = scmp.ne.s32.totalorder %s33, %s34
      %p45 = scmp.eq.s32.totalorder %s25, 0
      %p46 = por %p44, %p45
      %p47 = scmp.ne.s32.totalorder %s33, %s34
      %p48 = scmp.eq.s32.totalorder %s26, 1
      %p49 = por %p47, %p48
      %p51 = scmp.ne.s32.totalorder %s34, %s50
      %p52 = scmp.eq.s32.totalorder %s26, 0
      %p53 = por %p51, %p52
      %s54 = ssub.s32 %s20, %s27
      %p55 = scmp.eq.s32.totalorder %s54, 0
      %s57 = sadd.s32 %s56, 1
      %s58 = scalar_select %p55, %s56, %s57
      %p61 = pneg %p55
      %p62 = scmp.eq.s32.totalorder %s20, 1
      %p63 = por %p61, %p62
      %p64 = scmp.ne.s32.totalorder %s56, %s59
      %p65 = scmp.eq.s32.totalorder %s20, 0
      %p66 = por %p64, %p65
      %p67 = scmp.ne.s32.totalorder %s56, %s59
      %p68 = scmp.eq.s32.totalorder %s25, 1
      %p69 = por %p67, %p68
      %p70 = scmp.ne.s32.totalorder %s59, %s60
      %p71 = scmp.eq.s32.totalorder %s25, 0
      %p72 = por %p70, %p71
      %p73 = scmp.ne.s32.totalorder %s59, %s60
      %p74 = scmp.eq.s32.totalorder %s26, 1
      %p75 = por %p73, %p74
      %p77 = scmp.ne.s32.totalorder %s60, %s76
      %p78 = scmp.eq.s32.totalorder %s26, 0
      %p79 = por %p77, %p78
      %s81 = sadd.s32 %s80, 1
      %p84 = scmp.eq.s32.totalorder %s20, 1
      %p85 = scmp.ne.s32.totalorder %s80, %s82
      %p86 = scmp.eq.s32.totalorder %s20, 0
      %p87 = por %p85, %p86
      %p88 = scmp.ne.s32.totalorder %s80, %s82
      %p89 = scmp.eq.s32.totalorder %s25, 1
      %p90 = por %p88, %p89
      %p91 = scmp.ne.s32.totalorder %s82, %s83
      %p92 = scmp.eq.s32.totalorder %s25, 0
      %p93 = por %p91, %p92
      %p94 = scmp.ne.s32.totalorder %s82, %s83
      %p95 = scmp.eq.s32.totalorder %s26, 1
      %p96 = por %p94, %p95
      %p98 = scmp.ne.s32.totalorder %s83, %s97
      %p99 = scmp.eq.s32.totalorder %s26, 0
      %p100 = por %p98, %p99
      %s102 = sadd.s32 %s101, 1
      %p105 = scmp.eq.s32.totalorder %s20, 1
      %p106 = scmp.ne.s32.totalorder %s101, %s103
      %p107 = scmp.eq.s32.totalorder %s20, 0
      %p108 = por %p106, %p107
      %p109 = scmp.ne.s32.totalorder %s101, %s103
      %p110 = scmp.eq.s32.totalorder %s25, 1
      %p111 = por %p109, %p110
      %p112 = scmp.ne.s32.totalorder %s103, %s104
      %p113 = scmp.eq.s32.totalorder %s25, 0
      %p114 = por %p112, %p113
      %p115 = scmp.ne.s32.totalorder %s103, %s104
      %p116 = scmp.eq.s32.totalorder %s26, 1
      %p117 = por %p115, %p116
      %p119 = scmp.ne.s32.totalorder %s104, %s118
      %p120 = scmp.eq.s32.totalorder %s26, 0
      %p121 = por %p119, %p120
      %s123 = sadd.s32 %s122, 1
      %p126 = scmp.eq.s32.totalorder %s20, 1
      %p127 = scmp.ne.s32.totalorder %s122, %s124
      %p128 = scmp.eq.s32.totalorder %s20, 0
      %p129 = por %p127, %p128
      %p130 = scmp.ne.s32.totalorder %s122, %s124
      %p131 = scmp.eq.s32.totalorder %s25, 1
      %p132 = por %p130, %p131
      %p133 = scmp.ne.s32.totalorder %s124, %s125
      %p134 = scmp.eq.s32.totalorder %s25, 0
      %p135 = por %p133, %p134
      %p136 = scmp.ne.s32.totalorder %s124, %s125
      %p137 = scmp.eq.s32.totalorder %s26, 1
      %p138 = por %p136, %p137
      %p140 = scmp.ne.s32.totalorder %s125, %s139
      %p141 = scmp.eq.s32.totalorder %s26, 0
      %p142 = por %p140, %p141
      %s144 = sadd.s32 %s143, 1
      %p147 = scmp.eq.s32.totalorder %s20, 1
      %p148 = scmp.ne.s32.totalorder %s143, %s145
      %p149 = scmp.eq.s32.totalorder %s20, 0
      %p150 = por %p148, %p149
      %p151 = scmp.ne.s32.totalorder %s143, %s145
      %p152 = scmp.eq.s32.totalorder %s25, 1
      %p153 = por %p151, %p152
      %p154 = scmp.ne.s32.totalorder %s145, %s146
      %p155 = scmp.eq.s32.totalorder %s25, 0
      %p156 = por %p154, %p155
      %p157 = scmp.ne.s32.totalorder %s145, %s146
      %p158 = scmp.eq.s32.totalorder %s26, 1
      %p159 = por %p157, %p158
      %p161 = scmp.ne.s32.totalorder %s146, %s160
      %p162 = scmp.eq.s32.totalorder %s26, 0
      %p163 = por %p161, %p162
      %s165 = sadd.s32 %s164, 1
      %p168 = scmp.eq.s32.totalorder %s20, 1
      %p169 = scmp.ne.s32.totalorder %s164, %s166
      %p170 = scmp.eq.s32.totalorder %s20, 0
      %p171 = por %p169, %p170
      %p172 = scmp.ne.s32.totalorder %s164, %s166
      %p173 = scmp.eq.s32.totalorder %s25, 1
      %p174 = por %p172, %p173
      %p175 = scmp.ne.s32.totalorder %s166, %s167
      %p176 = scmp.eq.s32.totalorder %s25, 0
      %p177 = por %p175, %p176
      %p178 = scmp.ne.s32.totalorder %s166, %s167
      %p179 = scmp.eq.s32.totalorder %s26, 1
      %p180 = por %p178, %p179
      %p182 = scmp.ne.s32.totalorder %s167, %s181
      %p183 = scmp.eq.s32.totalorder %s26, 0
      %p184 = por %p182, %p183
      %s186 = sadd.s32 %s185, 1
      %p189 = scmp.eq.s32.totalorder %s20, 1
      %p190 = scmp.ne.s32.totalorder %s185, %s187
      %p191 = scmp.eq.s32.totalorder %s20, 0
      %p192 = por %p190, %p191
      %p193 = scmp.ne.s32.totalorder %s185, %s187
      %p194 = scmp.eq.s32.totalorder %s25, 1
      %p195 = por %p193, %p194
      %p196 = scmp.ne.s32.totalorder %s187, %s188
      %p197 = scmp.eq.s32.totalorder %s25, 0
      %p198 = por %p196, %p197
      %p199 = scmp.ne.s32.totalorder %s187, %s188
      %p200 = scmp.eq.s32.totalorder %s26, 1
      %p201 = por %p199, %p200
      %p203 = scmp.ne.s32.totalorder %s188, %s202
      %p204 = scmp.eq.s32.totalorder %s26, 0
      %p205 = por %p203, %p204
      %s207 = sadd.s32 %s206, 1
      %p210 = scmp.eq.s32.totalorder %s20, 1
      %p211 = scmp.ne.s32.totalorder %s206, %s208
      %p212 = scmp.eq.s32.totalorder %s20, 0
      %p213 = por %p211, %p212
      %p214 = scmp.ne.s32.totalorder %s206, %s208
      %p215 = scmp.eq.s32.totalorder %s25, 1
      %p216 = por %p214, %p215
      %p217 = scmp.ne.s32.totalorder %s208, %s209
      %p218 = scmp.eq.s32.totalorder %s25, 0
      %p219 = por %p217, %p218
      %p220 = scmp.ne.s32.totalorder %s208, %s209
      %p221 = scmp.eq.s32.totalorder %s26, 1
      %p222 = por %p220, %p221
      %p224 = scmp.ne.s32.totalorder %s209, %s223
      %p225 = scmp.eq.s32.totalorder %s26, 0
      %p226 = por %p224, %p225
      %s228 = sadd.s32 %s227, 1
      %p231 = scmp.eq.s32.totalorder %s20, 1
      %p232 = scmp.ne.s32.totalorder %s227, %s229
      %p233 = scmp.eq.s32.totalorder %s20, 0
      %p234 = por %p232, %p233
      %p235 = scmp.ne.s32.totalorder %s227, %s229
      %p236 = scmp.eq.s32.totalorder %s25, 1
      %p237 = por %p235, %p236
      %p238 = scmp.ne.s32.totalorder %s229, %s230
      %p239 = scmp.eq.s32.totalorder %s25, 0
      %p240 = por %p238, %p239
      %p241 = scmp.ne.s32.totalorder %s229, %s230
      %p242 = scmp.eq.s32.totalorder %s26, 1
      %p243 = por %p241, %p242
      %p245 = scmp.ne.s32.totalorder %s230, %s244
      %p246 = scmp.eq.s32.totalorder %s26, 0
      %p247 = por %p245, %p246
      %s248 = ssub.s32 %s20, %s27
      %p249 = scmp.eq.s32.totalorder %s248, 0
      %s251 = sadd.s32 %s250, 1
      %s252 = scalar_select %p249, %s250, %s251
      %p255 = pneg %p249
      %p256 = scmp.eq.s32.totalorder %s20, 1
      %p257 = por %p255, %p256
      %p258 = scmp.ne.s32.totalorder %s250, %s253
      %p259 = scmp.eq.s32.totalorder %s20, 0
      %p260 = por %p258, %p259
      %p261 = scmp.ne.s32.totalorder %s250, %s253
      %p262 = scmp.eq.s32.totalorder %s25, 1
      %p263 = por %p261, %p262
      %p264 = scmp.ne.s32.totalorder %s253, %s254
      %p265 = scmp.eq.s32.totalorder %s25, 0
      %p266 = por %p264, %p265
      %p267 = scmp.ne.s32.totalorder %s253, %s254
      %p268 = scmp.eq.s32.totalorder %s26, 1
      %p269 = por %p267, %p268
      %p271 = scmp.ne.s32.totalorder %s254, %s270
      %p272 = scmp.eq.s32.totalorder %s26, 0
      %p273 = por %p271, %p272
      %p274 = scmp.le.s32.totalorder 1, %s20
      %p275 = scmp.lt.s32.totalorder %s20, 3
      %p276 = pnand %p274, %p275
      %p277 = pneg %p276
      // Predicated region
      $region9: #{tpu_custom_call.1} parent=5 // pred_check
        _
      $region10: #{tpu_custom_call.1} parent=5 // pred_check_branch
        %279 = sbr.rel (%p276) target = $region12
      $region11: #{tpu_custom_call.1} parent=5 // pred_region
        %s280 = ssub.s32 %s20, 1
        // Predicated region
        $region13: #{tpu_custom_call.1} parent=11 // pred_check
          %p281 = pneg %p93
        $region14: #{tpu_custom_call.1} parent=11 // pred_check_branch
          %283 = sbr.rel (%p281) target = $region16
        $region15: #{tpu_custom_call.1} parent=11 // pred_region
          %s285 = ssub.s32 1024, 1024
          %286 = vsyncadd [#allocation4], %s285
          %s287 = sshll.u32 [#allocation3], 4
          %s288 = int_to_ptr.vmem [resolvable:$true] %s287
          %293 = dma.hbm_to_vmem [thread:$0]  %s2, 1024, %s288, [#allocation4], 64, 64, 4
        $region16: #{tpu_custom_call.1} parent=11 // pred_fallthru
          _
        // Predicated region
        $region17: #{tpu_custom_call.1} parent=11 // pred_check
          %p294 = pneg %p114
        $region18: #{tpu_custom_call.1} parent=11 // pred_check_branch
          %296 = sbr.rel (%p294) target = $region20
        $region19: #{tpu_custom_call.1} parent=11 // pred_region
          %s298 = ssub.s32 2048, 2048
          %299 = vsyncadd [#allocation6], %s298
          %s300 = sshll.u32 [#allocation5], 4
          %s301 = int_to_ptr.vmem [resolvable:$true] %s300
          %306 = dma.hbm_to_vmem [thread:$0]  %s3, 2048, %s301, [#allocation6], 128, 128, 8
        $region20: #{tpu_custom_call.1} parent=11 // pred_fallthru
          _
        // Predicated region
        $region21: #{tpu_custom_call.1} parent=11 // pred_check
          %p307 = pneg %p135
        $region22: #{tpu_custom_call.1} parent=11 // pred_check_branch
          %309 = sbr.rel (%p307) target = $region24
        $region23: #{tpu_custom_call.1} parent=11 // pred_region
          %s311 = ssub.s32 8192, 8192
          %312 = vsyncadd [#allocation6], %s311
          %s313 = sshll.u32 [#allocation7], 4
          %s314 = int_to_ptr.vmem [resolvable:$true] %s313
          %319 = dma.hbm_to_vmem [thread:$0]  %s4, 8192, %s314, [#allocation6], 256, 256, 16
        $region24: #{tpu_custom_call.1} parent=11 // pred_fallthru
          _
        // Predicated region
        $region25: #{tpu_custom_call.1} parent=11 // pred_check
          %p320 = pneg %p156
        $region26: #{tpu_custom_call.1} parent=11 // pred_check_branch
          %322 = sbr.rel (%p320) target = $region28
        $region27: #{tpu_custom_call.1} parent=11 // pred_region
          _
        $region28: #{tpu_custom_call.1} parent=11 // pred_fallthru
          _
        // Predicated region
        $region29: #{tpu_custom_call.1} parent=11 // pred_check
          %p323 = pneg %p177
        $region30: #{tpu_custom_call.1} parent=11 // pred_check_branch
          %325 = sbr.rel (%p323) target = $region32
        $region31: #{tpu_custom_call.1} parent=11 // pred_region
          _
        $region32: #{tpu_custom_call.1} parent=11 // pred_fallthru
          _
        // Predicated region
        $region33: #{tpu_custom_call.1} parent=11 // pred_check
          %p326 = pneg %p198
        $region34: #{tpu_custom_call.1} parent=11 // pred_check_branch
          %328 = sbr.rel (%p326) target = $region36
        $region35: #{tpu_custom_call.1} parent=11 // pred_region
          _
        $region36: #{tpu_custom_call.1} parent=11 // pred_fallthru
          _
        // Predicated region
        $region37: #{tpu_custom_call.1} parent=11 // pred_check
          %p329 = pneg %p219
        $region38: #{tpu_custom_call.1} parent=11 // pred_check_branch
          %331 = sbr.rel (%p329) target = $region40
        $region39: #{tpu_custom_call.1} parent=11 // pred_region
          _
        $region40: #{tpu_custom_call.1} parent=11 // pred_fallthru
          _
        // Predicated region
        $region41: #{tpu_custom_call.1} parent=11 // pred_check
          %p332 = pneg %p240
        $region42: #{tpu_custom_call.1} parent=11 // pred_check_branch
          %334 = sbr.rel (%p332) target = $region44
        $region43: #{tpu_custom_call.1} parent=11 // pred_region
          _
        $region44: #{tpu_custom_call.1} parent=11 // pred_fallthru
          _
      $region12: #{tpu_custom_call.1} parent=5 // pred_fallthru
        _
      %p335 = scmp.lt.s32.totalorder %s20, 2
      // Predicated region
      $region45: #{tpu_custom_call.1} parent=5 // pred_check
        %p336 = pneg %p335
      $region46: #{tpu_custom_call.1} parent=5 // pred_check_branch
        %338 = sbr.rel (%p336) target = $region48
      $region47: #{tpu_custom_call.1} parent=5 // pred_region
        // Predicated region
        $region49: #{tpu_custom_call.1} parent=47 // pred_check
          %p339 = pneg %p40
        $region50: #{tpu_custom_call.1} parent=47 // pred_check_branch
          %341 = sbr.rel (%p339) target = $region52
        $region51: #{tpu_custom_call.1} parent=47 // pred_region
          %s342 = smul.u32 8, %s20
          %p343 = scmp.lt.s32.totalorder %s342, 15
          %s344 = scalar_select %p343, %s342, 15
          %s345 = smul.addr %s344, 8
          %s346 = scalar_lea.vmem %s0, %s345
          %s347 = smul.u32 8, %s20
        $region52: #{tpu_custom_call.1} parent=47 // pred_fallthru
          _
        // Predicated region
        $region53: #{tpu_custom_call.1} parent=47 // pred_check
          %p348 = pneg %p66
        $region54: #{tpu_custom_call.1} parent=47 // pred_check_branch
          %350 = sbr.rel (%p348) target = $region56
        $region55: #{tpu_custom_call.1} parent=47 // pred_region
          %s351 = smul.u32 8, %s20
          %p352 = scmp.lt.s32.totalorder %s351, 15
          %s353 = scalar_select %p352, %s351, 15
          %s354 = smul.addr %s353, 2
          %s355 = smul.addr %s354, 8
          %s356 = scalar_lea.vmem %s1, %s355
          %s357 = smul.u32 8, %s20
        $region56: #{tpu_custom_call.1} parent=47 // pred_fallthru
          _
      $region48: #{tpu_custom_call.1} parent=5 // pred_fallthru
        _
      %p358 = scmp.le.s32.totalorder 1, %s20
      %p359 = scmp.lt.s32.totalorder %s20, 3
      %p360 = pnand %p358, %p359
      %p361 = pneg %p360
      // Predicated region
      $region57: #{tpu_custom_call.1} parent=5 // pred_check
        _
      $region58: #{tpu_custom_call.1} parent=5 // pred_check_branch
        %363 = sbr.rel (%p360) target = $region60
      $region59: #{tpu_custom_call.1} parent=5 // pred_region
        %s364 = ssub.s32 %s20, 1
        // Predicated region
        $region61: #{tpu_custom_call.1} parent=59 // pred_check
          %p365 = pneg %p93
        $region62: #{tpu_custom_call.1} parent=59 // pred_check_branch
          %367 = sbr.rel (%p365) target = $region64
        $region63: #{tpu_custom_call.1} parent=59 // pred_region
          %368 = dma.done [#allocation4], 1024
        $region64: #{tpu_custom_call.1} parent=59 // pred_fallthru
          _
        // Predicated region
        $region65: #{tpu_custom_call.1} parent=59 // pred_check
          %p369 = pneg %p114
        $region66: #{tpu_custom_call.1} parent=59 // pred_check_branch
          %371 = sbr.rel (%p369) target = $region68
        $region67: #{tpu_custom_call.1} parent=59 // pred_region
          %372 = dma.done [#allocation6], 2048
        $region68: #{tpu_custom_call.1} parent=59 // pred_fallthru
          _
        // Predicated region
        $region69: #{tpu_custom_call.1} parent=59 // pred_check
          %p373 = pneg %p135
        $region70: #{tpu_custom_call.1} parent=59 // pred_check_branch
          %375 = sbr.rel (%p373) target = $region72
        $region71: #{tpu_custom_call.1} parent=59 // pred_region
          %376 = dma.done [#allocation6], 8192
        $region72: #{tpu_custom_call.1} parent=59 // pred_fallthru
          _
        %s377 = smul.u32 8, %s25
        %p378 = scmp.lt.s32.totalorder %s377, 15
        %s379 = scalar_select %p378, %s377, 15
        %s380 = smul.addr %s379, 8
        %s381 = scalar_lea.vmem %s0, %s380
        %p382 = pneg %p46
        %p383 = pneg %p43
        %s384 = smul.u32 8, %s25
        %p385 = scmp.lt.s32.totalorder %s384, 15
        %s386 = scalar_select %p385, %s384, 15
        %s387 = smul.addr %s386, 2
        %s388 = smul.addr %s387, 8
        %s389 = scalar_lea.vmem %s1, %s388
        %p390 = pneg %p72
        %p391 = pneg %p69
        %p392 = pneg %p93
        %p393 = pneg %p90
        %p394 = pneg %p114
        %p395 = pneg %p111
        %p396 = pneg %p135
        %p397 = pneg %p132
        %p398 = pneg %p156
        %p399 = pneg %p153
        %p400 = pneg %p177
        %p401 = pneg %p174
        %p402 = pneg %p198
        %p403 = pneg %p195
        %p404 = pneg %p219
        %p405 = pneg %p216
        %p406 = pneg %p240
        %p407 = pneg %p237
        %p408 = pneg %p266
        %p409 = pneg %p263
        %p410 = scmp.lt.s32.totalorder %s25, 1
        %s411 = scalar_select %p410, %s25, 1
        %s412 = smul.addr %s411, 8
        %s413 = scalar_lea.vmem %s10, %s412
        %s414 = smul.u32 8, %s25
        %p415 = scmp.lt.s32.totalorder %s414, 15
        %s416 = scalar_select %p415, %s414, 15
        %s417 = smul.addr %s416, 8
        %s418 = scalar_lea.vmem %s0, %s417
        %s419 = smul.u32 8, %s25
        %s420 = smul.u32 8, %s25
        %p421 = scmp.lt.s32.totalorder %s420, 15
        %s422 = scalar_select %p421, %s420, 15
        %s423 = smul.addr %s422, 2
        %s424 = smul.addr %s423, 8
        %s425 = scalar_lea.vmem %s1, %s424
        %s426 = smul.u32 8, %s25
        %p427 = scmp.lt.s32.totalorder %s25, 1
        %s428 = scalar_select %p427, %s25, 1
        %s429 = smul.addr %s428, 8
        %s430 = scalar_lea.vmem %s10, %s429
        %v432 = vld [vmem:[%s418] sm:$0xff]
        %v433 = vld [vmem:[%s418 + $0x8] sm:$0xff]
        %v434 = vld [vmem:[%s418 + $0x10] sm:$0xff]
        %v435 = vld [vmem:[%s418 + $0x18] sm:$0xff]
        %v436 = vld [vmem:[%s418 + $0x20] sm:$0xff]
        %v437 = vld [vmem:[%s418 + $0x28] sm:$0xff]
        %v438 = vld [vmem:[%s418 + $0x30] sm:$0xff]
        %v439 = vld [vmem:[%s418 + $0x38] sm:$0xff]
        %v440 = vpack.c.bf16 %v432, %v432
        %v441 = vpack.c.bf16 %v433, %v433
        %v442 = vpack.c.bf16 %v434, %v434
        %v443 = vpack.c.bf16 %v435, %v435
        %v444 = vpack.c.bf16 %v436, %v436
        %v445 = vpack.c.bf16 %v437, %v437
        %v446 = vpack.c.bf16 %v438, %v438
        %v447 = vpack.c.bf16 %v439, %v439
        %v448 = vld [vmem:[%s425] sm:$0xff]
        %v449 = vld [vmem:[%s425 + $0x8] sm:$0xff]
        %v450 = vld [vmem:[%s425 + $0x10] sm:$0xff]
        %v451 = vld [vmem:[%s425 + $0x18] sm:$0xff]
        %v452 = vld [vmem:[%s425 + $0x20] sm:$0xff]
        %v453 = vld [vmem:[%s425 + $0x28] sm:$0xff]
        %v454 = vld [vmem:[%s425 + $0x30] sm:$0xff]
        %v455 = vld [vmem:[%s425 + $0x38] sm:$0xff]
        %v456 = vld [vmem:[%s425 + $0x40] sm:$0xff]
        %v457 = vld [vmem:[%s425 + $0x48] sm:$0xff]
        %v458 = vld [vmem:[%s425 + $0x50] sm:$0xff]
        %v459 = vld [vmem:[%s425 + $0x58] sm:$0xff]
        %v460 = vld [vmem:[%s425 + $0x60] sm:$0xff]
        %v461 = vld [vmem:[%s425 + $0x68] sm:$0xff]
        %v462 = vld [vmem:[%s425 + $0x70] sm:$0xff]
        %v463 = vld [vmem:[%s425 + $0x78] sm:$0xff]
        %v464 = vpack.c.bf16 %v449, %v448
        %v465 = vpack.c.bf16 %v451, %v450
        %v466 = vpack.c.bf16 %v453, %v452
        %v467 = vpack.c.bf16 %v455, %v454
        %v468 = vpack.c.bf16 %v457, %v456
        %v469 = vpack.c.bf16 %v459, %v458
        %v470 = vpack.c.bf16 %v461, %v460
        %v471 = vpack.c.bf16 %v463, %v462
        %v472 = vld [vmem:[#allocation3] sm:$0xf]
        %v473 = vld [vmem:[#allocation3 + $0x4] sm:$0xf]
        %v474 = vld [vmem:[#allocation3 + $0x8] sm:$0xf]
        %v475 = vld [vmem:[#allocation3 + $0xc] sm:$0xf]
        %v476 = vld [vmem:[#allocation3 + $0x10] sm:$0xf]
        %v477 = vld [vmem:[#allocation3 + $0x14] sm:$0xf]
        %v478 = vld [vmem:[#allocation3 + $0x18] sm:$0xf]
        %v479 = vld [vmem:[#allocation3 + $0x1c] sm:$0xf]
        %v480 = vld [vmem:[#allocation3 + $0x20] sm:$0xf]
        %v481 = vld [vmem:[#allocation3 + $0x24] sm:$0xf]
        %v482 = vld [vmem:[#allocation3 + $0x28] sm:$0xf]
        %v483 = vld [vmem:[#allocation3 + $0x2c] sm:$0xf]
        %v484 = vld [vmem:[#allocation3 + $0x30] sm:$0xf]
        %v485 = vld [vmem:[#allocation3 + $0x34] sm:$0xf]
        %v486 = vld [vmem:[#allocation3 + $0x38] sm:$0xf]
        %v487 = vld [vmem:[#allocation3 + $0x3c] sm:$0xf]
        %v496 = vunpack.c.l.b16 %v440
        %v497 = vunpack.c.l.b16 %v441
        %v498 = vunpack.c.l.b16 %v442
        %v499 = vunpack.c.l.b16 %v443
        %v500 = vunpack.c.l.b16 %v444
        %v501 = vunpack.c.l.b16 %v445
        %v502 = vunpack.c.l.b16 %v446
        %v503 = vunpack.c.l.b16 %v447
        %v504 = vpack.c.b16 %v497, %v496
        %v505 = vpack.c.b16 %v499, %v498
        %v506 = vpack.c.b16 %v501, %v500
        %v507 = vpack.c.b16 %v503, %v502
        %v528 = vunpack.c.l.b16 %v472
        %v529 = vunpack.c.l.b16 %v473
        %v530 = vunpack.c.l.b16 %v474
        %v531 = vunpack.c.l.b16 %v475
        %v532 = vunpack.c.l.b16 %v476
        %v533 = vunpack.c.l.b16 %v477
        %v534 = vunpack.c.l.b16 %v478
        %v535 = vunpack.c.l.b16 %v479
        %v536 = vunpack.c.l.b16 %v480
        %v537 = vunpack.c.l.b16 %v481
        %v538 = vunpack.c.l.b16 %v482
        %v539 = vunpack.c.l.b16 %v483
        %v540 = vunpack.c.l.b16 %v484
        %v541 = vunpack.c.l.b16 %v485
        %v542 = vunpack.c.l.b16 %v486
        %v543 = vunpack.c.l.b16 %v487
        %v544 = vpack.c.b16 %v529, %v528
        %v545 = vpack.c.b16 %v531, %v530
        %v546 = vpack.c.b16 %v533, %v532
        %v547 = vpack.c.b16 %v535, %v534
        %v548 = vpack.c.b16 %v537, %v536
        %v549 = vpack.c.b16 %v539, %v538
        %v550 = vpack.c.b16 %v541, %v540
        %v551 = vpack.c.b16 %v543, %v542
        %560 = vmatprep.subr.bf16.mxu0 0
        %561 = vmatpush1.bf16.msra.mxu0 %v551
        %562 = vmatprep.subr.bf16.mxu0 0
        %563 = vmatpush1.bf16.msra.mxu0 %v550
        %564 = vmatprep.subr.bf16.mxu0 0
        %565 = vmatpush1.bf16.msra.mxu0 %v549
        %566 = vmatprep.subr.bf16.mxu0 0
        %567 = vmatpush1.bf16.msra.mxu0 %v548
        %568 = vmatprep.subr.bf16.mxu0 0
        %569 = vmatpush1.bf16.msra.mxu0 %v547
        %570 = vmatprep.subr.bf16.mxu0 0
        %571 = vmatpush1.bf16.msra.mxu0 %v546
        %572 = vmatprep.subr.bf16.mxu0 0
        %573 = vmatpush1.bf16.msra.mxu0 %v545
        %574 = vmatprep.subr.bf16.mxu0 0
        %575 = vmatpush1.bf16.msra.mxu0 %v544
        %576 = vmatprep.subr.bf16.mxu0 0
        %577 = vmatpush2.bf16.msra.mxu0 0
        %578 = vmatprep.subr.bf16.mxu0 0
        %579 = vmatpush2.bf16.msra.mxu0 0
        %580 = vmatprep.subr.bf16.mxu0 0
        %581 = vmatpush2.bf16.msra.mxu0 0
        %582 = vmatprep.subr.bf16.mxu0 0
        %583 = vmatpush2.bf16.msra.mxu0 0
        %584 = vmatprep.subr.bf16.mxu0 0
        %585 = vmatpush2.bf16.msra.mxu0 0
        %586 = vmatprep.subr.bf16.mxu0 0
        %587 = vmatpush2.bf16.msra.mxu0 0
        %588 = vmatprep.subr.bf16.mxu0 0
        %589 = vmatpush2.bf16.msra.mxu0 0
        %590 = vmatprep.subr.bf16.mxu0 0
        %591 = vmatpush2.bf16.msra.mxu0 0
        %592 = vmatprep.mubr.bf16.mxu0 0
        %593 = vmatmul.mubr.bf16.gmra.mxu0 %v504
        %v594 = vpop.f32.mrf.mxu0
        %v595 = vadd.f32 0.0, %v594
        %v596 = vpop.f32.mrf.mxu0
        %v597 = vpop.f32.mrf.mxu0
        %v598 = vadd.f32 0.0, %v597
        %v599 = vpop.f32.mrf.mxu0
        %600 = vmatprep.mubr.bf16.mxu0 0
        %601 = vmatmul.mubr.bf16.gmra.mxu0 %v505
        %v602 = vpop.f32.mrf.mxu0
        %v603 = vadd.f32 0.0, %v602
        %v604 = vpop.f32.mrf.mxu0
        %v605 = vpop.f32.mrf.mxu0
        %v606 = vadd.f32 0.0, %v605
        %v607 = vpop.f32.mrf.mxu0
        %608 = vmatprep.mubr.bf16.mxu0 0
        %609 = vmatmul.mubr.bf16.gmra.mxu0 %v506
        %v610 = vpop.f32.mrf.mxu0
        %v611 = vadd.f32 0.0, %v610
        %v612 = vpop.f32.mrf.mxu0
        %v613 = vpop.f32.mrf.mxu0
        %v614 = vadd.f32 0.0, %v613
        %v615 = vpop.f32.mrf.mxu0
        %616 = vmatprep.mubr.bf16.mxu0 0
        %617 = vmatmul.mubr.bf16.gmra.mxu0 %v507
        %v618 = vpop.f32.mrf.mxu0
        %v619 = vadd.f32 0.0, %v618
        %v620 = vpop.f32.mrf.mxu0
        %v621 = vpop.f32.mrf.mxu0
        %v622 = vadd.f32 0.0, %v621
        %v623 = vpop.f32.mrf.mxu0
        %624 = vdwg.mxu0
        %v625 = vld [vmem:[#allocation5] sm:$0xff]
        %v626 = vld [vmem:[#allocation5 + $0x8] sm:$0xff]
        %v627 = vld [vmem:[#allocation5 + $0x10] sm:$0xff]
        %v628 = vld [vmem:[#allocation5 + $0x18] sm:$0xff]
        %v629 = vld [vmem:[#allocation5 + $0x20] sm:$0xff]
        %v630 = vld [vmem:[#allocation5 + $0x28] sm:$0xff]
        %v631 = vld [vmem:[#allocation5 + $0x30] sm:$0xff]
        %v632 = vld [vmem:[#allocation5 + $0x38] sm:$0xff]
        %v633 = vld [vmem:[#allocation5 + $0x40] sm:$0xff]
        %v634 = vld [vmem:[#allocation5 + $0x48] sm:$0xff]
        %v635 = vld [vmem:[#allocation5 + $0x50] sm:$0xff]
        %v636 = vld [vmem:[#allocation5 + $0x58] sm:$0xff]
        %v637 = vld [vmem:[#allocation5 + $0x60] sm:$0xff]
        %v638 = vld [vmem:[#allocation5 + $0x68] sm:$0xff]
        %v639 = vld [vmem:[#allocation5 + $0x70] sm:$0xff]
        %v640 = vld [vmem:[#allocation5 + $0x78] sm:$0xff]
        %v657 = vunpack.c.l.b16 %v625
        %v658 = vunpack.c.h.b16 %v625
        %v659 = vunpack.c.l.b16 %v626
        %v660 = vunpack.c.h.b16 %v626
        %v661 = vunpack.c.l.b16 %v627
        %v662 = vunpack.c.h.b16 %v627
        %v663 = vunpack.c.l.b16 %v628
        %v664 = vunpack.c.h.b16 %v628
        %v665 = vunpack.c.l.b16 %v629
        %v666 = vunpack.c.h.b16 %v629
        %v667 = vunpack.c.l.b16 %v630
        %v668 = vunpack.c.h.b16 %v630
        %v669 = vunpack.c.l.b16 %v631
        %v670 = vunpack.c.h.b16 %v631
        %v671 = vunpack.c.l.b16 %v632
        %v672 = vunpack.c.h.b16 %v632
        %v673 = vunpack.c.l.b16 %v633
        %v674 = vunpack.c.h.b16 %v633
        %v675 = vunpack.c.l.b16 %v634
        %v676 = vunpack.c.h.b16 %v634
        %v677 = vunpack.c.l.b16 %v635
        %v678 = vunpack.c.h.b16 %v635
        %v679 = vunpack.c.l.b16 %v636
        %v680 = vunpack.c.h.b16 %v636
        %v681 = vunpack.c.l.b16 %v637
        %v682 = vunpack.c.h.b16 %v637
        %v683 = vunpack.c.l.b16 %v638
        %v684 = vunpack.c.h.b16 %v638
        %v685 = vunpack.c.l.b16 %v639
        %v686 = vunpack.c.h.b16 %v639
        %v687 = vunpack.c.l.b16 %v640
        %v688 = vunpack.c.h.b16 %v640
        %v689 = vpack.c.b16 %v659, %v657
        %v690 = vpack.c.b16 %v660, %v658
        %v691 = vpack.c.b16 %v663, %v661
        %v692 = vpack.c.b16 %v664, %v662
        %v693 = vpack.c.b16 %v667, %v665
        %v694 = vpack.c.b16 %v668, %v666
        %v695 = vpack.c.b16 %v671, %v669
        %v696 = vpack.c.b16 %v672, %v670
        %v697 = vpack.c.b16 %v675, %v673
        %v698 = vpack.c.b16 %v676, %v674
        %v699 = vpack.c.b16 %v679, %v677
        %v700 = vpack.c.b16 %v680, %v678
        %v701 = vpack.c.b16 %v683, %v681
        %v702 = vpack.c.b16 %v684, %v682
        %v703 = vpack.c.b16 %v687, %v685
        %v704 = vpack.c.b16 %v688, %v686
        %721 = vmatprep.subr.bf16.mxu0 %v704
        %722 = vmatpush1.bf16.msra.mxu0 %v703
        %723 = vmatprep.subr.bf16.mxu0 %v702
        %724 = vmatpush1.bf16.msra.mxu0 %v701
        %725 = vmatprep.subr.bf16.mxu0 %v700
        %726 = vmatpush1.bf16.msra.mxu0 %v699
        %727 = vmatprep.subr.bf16.mxu0 %v698
        %728 = vmatpush1.bf16.msra.mxu0 %v697
        %729 = vmatprep.subr.bf16.mxu0 %v696
        %730 = vmatpush1.bf16.msra.mxu0 %v695
        %731 = vmatprep.subr.bf16.mxu0 %v694
        %732 = vmatpush1.bf16.msra.mxu0 %v693
        %733 = vmatprep.subr.bf16.mxu0 %v692
        %734 = vmatpush1.bf16.msra.mxu0 %v691
        %735 = vmatprep.subr.bf16.mxu0 %v690
        %736 = vmatpush1.bf16.msra.mxu0 %v689
        %737 = vmatprep.subr.bf16.mxu0 0
        %738 = vmatpush2.bf16.msra.mxu0 0
        %739 = vmatprep.subr.bf16.mxu0 0
        %740 = vmatpush2.bf16.msra.mxu0 0
        %741 = vmatprep.subr.bf16.mxu0 0
        %742 = vmatpush2.bf16.msra.mxu0 0
        %743 = vmatprep.subr.bf16.mxu0 0
        %744 = vmatpush2.bf16.msra.mxu0 0
        %745 = vmatprep.subr.bf16.mxu0 0
        %746 = vmatpush2.bf16.msra.mxu0 0
        %747 = vmatprep.subr.bf16.mxu0 0
        %748 = vmatpush2.bf16.msra.mxu0 0
        %749 = vmatprep.subr.bf16.mxu0 0
        %750 = vmatpush2.bf16.msra.mxu0 0
        %751 = vmatprep.subr.bf16.mxu0 0
        %752 = vmatpush2.bf16.msra.mxu0 0
        %753 = vmatprep.mubr.bf16.mxu0 0
        %754 = vmatmul.mubr.bf16.gmra.mxu0 %v464
        %v755 = vpop.f32.mrf.mxu0
        %v756 = vadd.f32 0.0, %v755
        %v757 = vpop.f32.mrf.mxu0
        %v758 = vadd.f32 0.0, %v757
        %v759 = vpop.f32.mrf.mxu0
        %v760 = vadd.f32 0.0, %v759
        %v761 = vpop.f32.mrf.mxu0
        %v762 = vadd.f32 0.0, %v761
        %763 = vmatprep.mubr.bf16.mxu0 0
        %764 = vmatmul.mubr.bf16.gmra.mxu0 %v465
        %v765 = vpop.f32.mrf.mxu0
        %v766 = vadd.f32 0.0, %v765
        %v767 = vpop.f32.mrf.mxu0
        %v768 = vadd.f32 0.0, %v767
        %v769 = vpop.f32.mrf.mxu0
        %v770 = vadd.f32 0.0, %v769
        %v771 = vpop.f32.mrf.mxu0
        %v772 = vadd.f32 0.0, %v771
        %773 = vmatprep.mubr.bf16.mxu0 0
        %774 = vmatmul.mubr.bf16.gmra.mxu0 %v466
        %v775 = vpop.f32.mrf.mxu0
        %v776 = vadd.f32 0.0, %v775
        %v777 = vpop.f32.mrf.mxu0
        %v778 = vadd.f32 0.0, %v777
        %v779 = vpop.f32.mrf.mxu0
        %v780 = vadd.f32 0.0, %v779
        %v781 = vpop.f32.mrf.mxu0
        %v782 = vadd.f32 0.0, %v781
        %783 = vmatprep.mubr.bf16.mxu0 0
        %784 = vmatmul.mubr.bf16.gmra.mxu0 %v467
        %v785 = vpop.f32.mrf.mxu0
        %v786 = vadd.f32 0.0, %v785
        %v787 = vpop.f32.mrf.mxu0
        %v788 = vadd.f32 0.0, %v787
        %v789 = vpop.f32.mrf.mxu0
        %v790 = vadd.f32 0.0, %v789
        %v791 = vpop.f32.mrf.mxu0
        %v792 = vadd.f32 0.0, %v791
        %793 = vmatprep.mubr.bf16.mxu0 0
        %794 = vmatmul.mubr.bf16.gmra.mxu0 %v468
        %v795 = vpop.f32.mrf.mxu0
        %v796 = vadd.f32 0.0, %v795
        %v797 = vpop.f32.mrf.mxu0
        %v798 = vadd.f32 0.0, %v797
        %v799 = vpop.f32.mrf.mxu0
        %v800 = vadd.f32 0.0, %v799
        %v801 = vpop.f32.mrf.mxu0
        %v802 = vadd.f32 0.0, %v801
        %803 = vmatprep.mubr.bf16.mxu0 0
        %804 = vmatmul.mubr.bf16.gmra.mxu0 %v469
        %v805 = vpop.f32.mrf.mxu0
        %v806 = vadd.f32 0.0, %v805
        %v807 = vpop.f32.mrf.mxu0
        %v808 = vadd.f32 0.0, %v807
        %v809 = vpop.f32.mrf.mxu0
        %v810 = vadd.f32 0.0, %v809
        %v811 = vpop.f32.mrf.mxu0
        %v812 = vadd.f32 0.0, %v811
        %813 = vmatprep.mubr.bf16.mxu0 0
        %814 = vmatmul.mubr.bf16.gmra.mxu0 %v470
        %v815 = vpop.f32.mrf.mxu0
        %v816 = vadd.f32 0.0, %v815
        %v817 = vpop.f32.mrf.mxu0
        %v818 = vadd.f32 0.0, %v817
        %v819 = vpop.f32.mrf.mxu0
        %v820 = vadd.f32 0.0, %v819
        %v821 = vpop.f32.mrf.mxu0
        %v822 = vadd.f32 0.0, %v821
        %823 = vmatprep.mubr.bf16.mxu0 0
        %824 = vmatmul.mubr.bf16.gmra.mxu0 %v471
        %v825 = vpop.f32.mrf.mxu0
        %v826 = vadd.f32 0.0, %v825
        %v827 = vpop.f32.mrf.mxu0
        %v828 = vadd.f32 0.0, %v827
        %v829 = vpop.f32.mrf.mxu0
        %v830 = vadd.f32 0.0, %v829
        %v831 = vpop.f32.mrf.mxu0
        %v832 = vadd.f32 0.0, %v831
        %833 = vdwg.mxu0
        %v834 = vpack.c.bf16 %v595, %v595
        %v835 = vpack.c.bf16 %v598, %v598
        %v836 = vpack.c.bf16 %v603, %v603
        %v837 = vpack.c.bf16 %v606, %v606
        %v838 = vpack.c.bf16 %v611, %v611
        %v839 = vpack.c.bf16 %v614, %v614
        %v840 = vpack.c.bf16 %v619, %v619
        %v841 = vpack.c.bf16 %v622, %v622
        %v842 = vpack.c.bf16 %v760, %v756
        %v843 = vpack.c.bf16 %v770, %v766
        %v844 = vpack.c.bf16 %v780, %v776
        %v845 = vpack.c.bf16 %v790, %v786
        %v846 = vpack.c.bf16 %v800, %v796
        %v847 = vpack.c.bf16 %v810, %v806
        %v848 = vpack.c.bf16 %v820, %v816
        %v849 = vpack.c.bf16 %v830, %v826
        %850 = vmatprep.subr.bf16.mxu0 0
        %851 = vmatpush1.bf16.xpose.msra.mxu0 0
        %852 = vmatprep.subr.bf16.mxu0 0
        %853 = vmatpush1.bf16.xpose.msra.mxu0 0
        %854 = vmatprep.subr.bf16.mxu0 0
        %855 = vmatpush1.bf16.xpose.msra.mxu0 0
        %856 = vmatprep.subr.bf16.mxu0 0
        %857 = vmatpush1.bf16.xpose.msra.mxu0 0
        %858 = vmatprep.subr.bf16.mxu0 0
        %859 = vmatpush1.bf16.xpose.msra.mxu0 0
        %860 = vmatprep.subr.bf16.mxu0 0
        %861 = vmatpush1.bf16.xpose.msra.mxu0 0
        %862 = vmatprep.subr.bf16.mxu0 0
        %863 = vmatpush1.bf16.xpose.msra.mxu0 0
        %864 = vmatprep.subr.bf16.mxu0 0
        %865 = vmatpush1.bf16.xpose.msra.mxu0 %v842
        %866 = vmatprep.subr.bf16.mxu0 0
        %867 = vmatpush2.bf16.xpose.msra.mxu0 0
        %868 = vmatprep.subr.bf16.mxu0 0
        %869 = vmatpush2.bf16.xpose.msra.mxu0 0
        %870 = vmatprep.subr.bf16.mxu0 0
        %871 = vmatpush2.bf16.xpose.msra.mxu0 0
        %872 = vmatprep.subr.bf16.mxu0 0
        %873 = vmatpush2.bf16.xpose.msra.mxu0 0
        %874 = vmatprep.subr.bf16.mxu0 0
        %875 = vmatpush2.bf16.xpose.msra.mxu0 0
        %876 = vmatprep.subr.bf16.mxu0 0
        %877 = vmatpush2.bf16.xpose.msra.mxu0 0
        %878 = vmatprep.subr.bf16.mxu0 0
        %879 = vmatpush2.bf16.xpose.msra.mxu0 0
        %880 = vmatprep.subr.bf16.mxu0 0
        %881 = vmatpush2.bf16.xpose.msra.mxu0 0
        %882 = vmatprep.mubr.bf16.mxu0 0
        %883 = vmatmul.mubr.bf16.gmra.mxu0 %v834
        %v884 = vpop.f32.mrf.mxu0
        %v885 = vadd.f32 0.0, %v884
        %v886 = vpop.f32.mrf.mxu0
        %v887 = vpop.f32.mrf.mxu0
        %v888 = vpop.f32.mrf.mxu0
        %889 = vdwg.mxu0
        %890 = vmatprep.subr.bf16.mxu0 0
        %891 = vmatpush1.bf16.xpose.msra.mxu0 0
        %892 = vmatprep.subr.bf16.mxu0 0
        %893 = vmatpush1.bf16.xpose.msra.mxu0 0
        %894 = vmatprep.subr.bf16.mxu0 0
        %895 = vmatpush1.bf16.xpose.msra.mxu0 0
        %896 = vmatprep.subr.bf16.mxu0 0
        %897 = vmatpush1.bf16.xpose.msra.mxu0 0
        %898 = vmatprep.subr.bf16.mxu0 0
        %899 = vmatpush1.bf16.xpose.msra.mxu0 0
        %900 = vmatprep.subr.bf16.mxu0 0
        %901 = vmatpush1.bf16.xpose.msra.mxu0 0
        %902 = vmatprep.subr.bf16.mxu0 0
        %903 = vmatpush1.bf16.xpose.msra.mxu0 0
        %904 = vmatprep.subr.bf16.mxu0 0
        %905 = vmatpush1.bf16.xpose.msra.mxu0 %v843
        %906 = vmatprep.subr.bf16.mxu0 0
        %907 = vmatpush2.bf16.xpose.msra.mxu0 0
        %908 = vmatprep.subr.bf16.mxu0 0
        %909 = vmatpush2.bf16.xpose.msra.mxu0 0
        %910 = vmatprep.subr.bf16.mxu0 0
        %911 = vmatpush2.bf16.xpose.msra.mxu0 0
        %912 = vmatprep.subr.bf16.mxu0 0
        %913 = vmatpush2.bf16.xpose.msra.mxu0 0
        %914 = vmatprep.subr.bf16.mxu0 0
        %915 = vmatpush2.bf16.xpose.msra.mxu0 0
        %916 = vmatprep.subr.bf16.mxu0 0
        %917 = vmatpush2.bf16.xpose.msra.mxu0 0
        %918 = vmatprep.subr.bf16.mxu0 0
        %919 = vmatpush2.bf16.xpose.msra.mxu0 0
        %920 = vmatprep.subr.bf16.mxu0 0
        %921 = vmatpush2.bf16.xpose.msra.mxu0 0
        %922 = vmatprep.mubr.bf16.mxu0 0
        %923 = vmatmul.mubr.bf16.gmra.mxu0 %v835
        %v924 = vpop.f32.mrf.mxu0
        %v925 = vadd.f32 0.0, %v924
        %v926 = vpop.f32.mrf.mxu0
        %v927 = vpop.f32.mrf.mxu0
        %v928 = vpop.f32.mrf.mxu0
        %929 = vdwg.mxu0
        %930 = vmatprep.subr.bf16.mxu0 0
        %931 = vmatpush1.bf16.xpose.msra.mxu0 0
        %932 = vmatprep.subr.bf16.mxu0 0
        %933 = vmatpush1.bf16.xpose.msra.mxu0 0
        %934 = vmatprep.subr.bf16.mxu0 0
        %935 = vmatpush1.bf16.xpose.msra.mxu0 0
        %936 = vmatprep.subr.bf16.mxu0 0
        %937 = vmatpush1.bf16.xpose.msra.mxu0 0
        %938 = vmatprep.subr.bf16.mxu0 0
        %939 = vmatpush1.bf16.xpose.msra.mxu0 0
        %940 = vmatprep.subr.bf16.mxu0 0
        %941 = vmatpush1.bf16.xpose.msra.mxu0 0
        %942 = vmatprep.subr.bf16.mxu0 0
        %943 = vmatpush1.bf16.xpose.msra.mxu0 0
        %944 = vmatprep.subr.bf16.mxu0 0
        %945 = vmatpush1.bf16.xpose.msra.mxu0 %v844
        %946 = vmatprep.subr.bf16.mxu0 0
        %947 = vmatpush2.bf16.xpose.msra.mxu0 0
        %948 = vmatprep.subr.bf16.mxu0 0
        %949 = vmatpush2.bf16.xpose.msra.mxu0 0
        %950 = vmatprep.subr.bf16.mxu0 0
        %951 = vmatpush2.bf16.xpose.msra.mxu0 0
        %952 = vmatprep.subr.bf16.mxu0 0
        %953 = vmatpush2.bf16.xpose.msra.mxu0 0
        %954 = vmatprep.subr.bf16.mxu0 0
        %955 = vmatpush2.bf16.xpose.msra.mxu0 0
        %956 = vmatprep.subr.bf16.mxu0 0
        %957 = vmatpush2.bf16.xpose.msra.mxu0 0
        %958 = vmatprep.subr.bf16.mxu0 0
        %959 = vmatpush2.bf16.xpose.msra.mxu0 0
        %960 = vmatprep.subr.bf16.mxu0 0
        %961 = vmatpush2.bf16.xpose.msra.mxu0 0
        %962 = vmatprep.mubr.bf16.mxu0 0
        %963 = vmatmul.mubr.bf16.gmra.mxu0 %v836
        %v964 = vpop.f32.mrf.mxu0
        %v965 = vadd.f32 0.0, %v964
        %v966 = vpop.f32.mrf.mxu0
        %v967 = vpop.f32.mrf.mxu0
        %v968 = vpop.f32.mrf.mxu0
        %969 = vdwg.mxu0
        %970 = vmatprep.subr.bf16.mxu0 0
        %971 = vmatpush1.bf16.xpose.msra.mxu0 0
        %972 = vmatprep.subr.bf16.mxu0 0
        %973 = vmatpush1.bf16.xpose.msra.mxu0 0
        %974 = vmatprep.subr.bf16.mxu0 0
        %975 = vmatpush1.bf16.xpose.msra.mxu0 0
        %976 = vmatprep.subr.bf16.mxu0 0
        %977 = vmatpush1.bf16.xpose.msra.mxu0 0
        %978 = vmatprep.subr.bf16.mxu0 0
        %979 = vmatpush1.bf16.xpose.msra.mxu0 0
        %980 = vmatprep.subr.bf16.mxu0 0
        %981 = vmatpush1.bf16.xpose.msra.mxu0 0
        %982 = vmatprep.subr.bf16.mxu0 0
        %983 = vmatpush1.bf16.xpose.msra.mxu0 0
        %984 = vmatprep.subr.bf16.mxu0 0
        %985 = vmatpush1.bf16.xpose.msra.mxu0 %v845
        %986 = vmatprep.subr.bf16.mxu0 0
        %987 = vmatpush2.bf16.xpose.msra.mxu0 0
        %988 = vmatprep.subr.bf16.mxu0 0
        %989 = vmatpush2.bf16.xpose.msra.mxu0 0
        %990 = vmatprep.subr.bf16.mxu0 0
        %991 = vmatpush2.bf16.xpose.msra.mxu0 0
        %992 = vmatprep.subr.bf16.mxu0 0
        %993 = vmatpush2.bf16.xpose.msra.mxu0 0
        %994 = vmatprep.subr.bf16.mxu0 0
        %995 = vmatpush2.bf16.xpose.msra.mxu0 0
        %996 = vmatprep.subr.bf16.mxu0 0
        %997 = vmatpush2.bf16.xpose.msra.mxu0 0
        %998 = vmatprep.subr.bf16.mxu0 0
        %999 = vmatpush2.bf16.xpose.msra.mxu0 0
        %1000 = vmatprep.subr.bf16.mxu0 0
        %1001 = vmatpush2.bf16.xpose.msra.mxu0 0
        %1002 = vmatprep.mubr.bf16.mxu0 0
        %1003 = vmatmul.mubr.bf16.gmra.mxu0 %v837
        %v1004 = vpop.f32.mrf.mxu0
        %v1005 = vadd.f32 0.0, %v1004
        %v1006 = vpop.f32.mrf.mxu0
        %v1007 = vpop.f32.mrf.mxu0
        %v1008 = vpop.f32.mrf.mxu0
        %1009 = vdwg.mxu0
        %1010 = vmatprep.subr.bf16.mxu0 0
        %1011 = vmatpush1.bf16.xpose.msra.mxu0 0
        %1012 = vmatprep.subr.bf16.mxu0 0
        %1013 = vmatpush1.bf16.xpose.msra.mxu0 0
        %1014 = vmatprep.subr.bf16.mxu0 0
        %1015 = vmatpush1.bf16.xpose.msra.mxu0 0
        %1016 = vmatprep.subr.bf16.mxu0 0
        %1017 = vmatpush1.bf16.xpose.msra.mxu0 0
        %1018 = vmatprep.subr.bf16.mxu0 0
        %1019 = vmatpush1.bf16.xpose.msra.mxu0 0
        %1020 = vmatprep.subr.bf16.mxu0 0
        %1021 = vmatpush1.bf16.xpose.msra.mxu0 0
        %1022 = vmatprep.subr.bf16.mxu0 0
        %1023 = vmatpush1.bf16.xpose.msra.mxu0 0
        %1024 = vmatprep.subr.bf16.mxu0 0
        %1025 = vmatpush1.bf16.xpose.msra.mxu0 %v846
        %1026 = vmatprep.subr.bf16.mxu0 0
        %1027 = vmatpush2.bf16.xpose.msra.mxu0 0
        %1028 = vmatprep.subr.bf16.mxu0 0
        %1029 = vmatpush2.bf16.xpose.msra.mxu0 0
        %1030 = vmatprep.subr.bf16.mxu0 0
        %1031 = vmatpush2.bf16.xpose.msra.mxu0 0
        %1032 = vmatprep.subr.bf16.mxu0 0
        %1033 = vmatpush2.bf16.xpose.msra.mxu0 0
        %1034 = vmatprep.subr.bf16.mxu0 0
        %1035 = vmatpush2.bf16.xpose.msra.mxu0 0
        %1036 = vmatprep.subr.bf16.mxu0 0
        %1037 = vmatpush2.bf16.xpose.msra.mxu0 0
        %1038 = vmatprep.subr.bf16.mxu0 0
        %1039 = vmatpush2.bf16.xpose.msra.mxu0 0
        %1040 = vmatprep.subr.bf16.mxu0 0
        %1041 = vmatpush2.bf16.xpose.msra.mxu0 0
        %1042 = vmatprep.mubr.bf16.mxu0 0
        %1043 = vmatmul.mubr.bf16.gmra.mxu0 %v838
        %v1044 = vpop.f32.mrf.mxu0
        %v1045 = vadd.f32 0.0, %v1044
        %v1046 = vpop.f32.mrf.mxu0
        %v1047 = vpop.f32.mrf.mxu0
        %v1048 = vpop.f32.mrf.mxu0
        %1049 = vdwg.mxu0
        %1050 = vmatprep.subr.bf16.mxu0 0
        %1051 = vmatpush1.bf16.xpose.msra.mxu0 0
        %1052 = vmatprep.subr.bf16.mxu0 0
        %1053 = vmatpush1.bf16.xpose.msra.mxu0 0
        %1054 = vmatprep.subr.bf16.mxu0 0
        %1055 = vmatpush1.bf16.xpose.msra.mxu0 0
        %1056 = vmatprep.subr.bf16.mxu0 0
        %1057 = vmatpush1.bf16.xpose.msra.mxu0 0
        %1058 = vmatprep.subr.bf16.mxu0 0
        %1059 = vmatpush1.bf16.xpose.msra.mxu0 0
        %1060 = vmatprep.subr.bf16.mxu0 0
        %1061 = vmatpush1.bf16.xpose.msra.mxu0 0
        %1062 = vmatprep.subr.bf16.mxu0 0
        %1063 = vmatpush1.bf16.xpose.msra.mxu0 0
        %1064 = vmatprep.subr.bf16.mxu0 0
        %1065 = vmatpush1.bf16.xpose.msra.mxu0 %v847
        %1066 = vmatprep.subr.bf16.mxu0 0
        %1067 = vmatpush2.bf16.xpose.msra.mxu0 0
        %1068 = vmatprep.subr.bf16.mxu0 0
        %1069 = vmatpush2.bf16.xpose.msra.mxu0 0
        %1070 = vmatprep.subr.bf16.mxu0 0
        %1071 = vmatpush2.bf16.xpose.msra.mxu0 0
        %1072 = vmatprep.subr.bf16.mxu0 0
        %1073 = vmatpush2.bf16.xpose.msra.mxu0 0
        %1074 = vmatprep.subr.bf16.mxu0 0
        %1075 = vmatpush2.bf16.xpose.msra.mxu0 0
        %1076 = vmatprep.subr.bf16.mxu0 0
        %1077 = vmatpush2.bf16.xpose.msra.mxu0 0
        %1078 = vmatprep.subr.bf16.mxu0 0
        %1079 = vmatpush2.bf16.xpose.msra.mxu0 0
        %1080 = vmatprep.subr.bf16.mxu0 0
        %1081 = vmatpush2.bf16.xpose.msra.mxu0 0
        %1082 = vmatprep.mubr.bf16.mxu0 0
        %1083 = vmatmul.mubr.bf16.gmra.mxu0 %v839
        %v1084 = vpop.f32.mrf.mxu0
        %v1085 = vadd.f32 0.0, %v1084
        %v1086 = vpop.f32.mrf.mxu0
        %v1087 = vpop.f32.mrf.mxu0
        %v1088 = vpop.f32.mrf.mxu0
        %1089 = vdwg.mxu0
        %1090 = vmatprep.subr.bf16.mxu0 0
        %1091 = vmatpush1.bf16.xpose.msra.mxu0 0
        %1092 = vmatprep.subr.bf16.mxu0 0
        %1093 = vmatpush1.bf16.xpose.msra.mxu0 0
        %1094 = vmatprep.subr.bf16.mxu0 0
        %1095 = vmatpush1.bf16.xpose.msra.mxu0 0
        %1096 = vmatprep.subr.bf16.mxu0 0
        %1097 = vmatpush1.bf16.xpose.msra.mxu0 0
        %1098 = vmatprep.subr.bf16.mxu0 0
        %1099 = vmatpush1.bf16.xpose.msra.mxu0 0
        %1100 = vmatprep.subr.bf16.mxu0 0
        %1101 = vmatpush1.bf16.xpose.msra.mxu0 0
        %1102 = vmatprep.subr.bf16.mxu0 0
        %1103 = vmatpush1.bf16.xpose.msra.mxu0 0
        %1104 = vmatprep.subr.bf16.mxu0 0
        %1105 = vmatpush1.bf16.xpose.msra.mxu0 %v848
        %1106 = vmatprep.subr.bf16.mxu0 0
        %1107 = vmatpush2.bf16.xpose.msra.mxu0 0
        %1108 = vmatprep.subr.bf16.mxu0 0
        %1109 = vmatpush2.bf16.xpose.msra.mxu0 0
        %1110 = vmatprep.subr.bf16.mxu0 0
        %1111 = vmatpush2.bf16.xpose.msra.mxu0 0
        %1112 = vmatprep.subr.bf16.mxu0 0
        %1113 = vmatpush2.bf16.xpose.msra.mxu0 0
        %1114 = vmatprep.subr.bf16.mxu0 0
        %1115 = vmatpush2.bf16.xpose.msra.mxu0 0
        %1116 = vmatprep.subr.bf16.mxu0 0
        %1117 = vmatpush2.bf16.xpose.msra.mxu0 0
        %1118 = vmatprep.subr.bf16.mxu0 0
        %1119 = vmatpush2.bf16.xpose.msra.mxu0 0
        %1120 = vmatprep.subr.bf16.mxu0 0
        %1121 = vmatpush2.bf16.xpose.msra.mxu0 0
        %1122 = vmatprep.mubr.bf16.mxu0 0
        %1123 = vmatmul.mubr.bf16.gmra.mxu0 %v840
        %v1124 = vpop.f32.mrf.mxu0
        %v1125 = vadd.f32 0.0, %v1124
        %v1126 = vpop.f32.mrf.mxu0
        %v1127 = vpop.f32.mrf.mxu0
        %v1128 = vpop.f32.mrf.mxu0
        %1129 = vdwg.mxu0
        %1130 = vmatprep.subr.bf16.mxu0 0
        %1131 = vmatpush1.bf16.xpose.msra.mxu0 0
        %1132 = vmatprep.subr.bf16.mxu0 0
        %1133 = vmatpush1.bf16.xpose.msra.mxu0 0
        %1134 = vmatprep.subr.bf16.mxu0 0
        %1135 = vmatpush1.bf16.xpose.msra.mxu0 0
        %1136 = vmatprep.subr.bf16.mxu0 0
        %1137 = vmatpush1.bf16.xpose.msra.mxu0 0
        %1138 = vmatprep.subr.bf16.mxu0 0
        %1139 = vmatpush1.bf16.xpose.msra.mxu0 0
        %1140 = vmatprep.subr.bf16.mxu0 0
        %1141 = vmatpush1.bf16.xpose.msra.mxu0 0
        %1142 = vmatprep.subr.bf16.mxu0 0
        %1143 = vmatpush1.bf16.xpose.msra.mxu0 0
        %1144 = vmatprep.subr.bf16.mxu0 0
        %1145 = vmatpush1.bf16.xpose.msra.mxu0 %v849
        %1146 = vmatprep.subr.bf16.mxu0 0
        %1147 = vmatpush2.bf16.xpose.msra.mxu0 0
        %1148 = vmatprep.subr.bf16.mxu0 0
        %1149 = vmatpush2.bf16.xpose.msra.mxu0 0
        %1150 = vmatprep.subr.bf16.mxu0 0
        %1151 = vmatpush2.bf16.xpose.msra.mxu0 0
        %1152 = vmatprep.subr.bf16.mxu0 0
        %1153 = vmatpush2.bf16.xpose.msra.mxu0 0
        %1154 = vmatprep.subr.bf16.mxu0 0
        %1155 = vmatpush2.bf16.xpose.msra.mxu0 0
        %1156 = vmatprep.subr.bf16.mxu0 0
        %1157 = vmatpush2.bf16.xpose.msra.mxu0 0
        %1158 = vmatprep.subr.bf16.mxu0 0
        %1159 = vmatpush2.bf16.xpose.msra.mxu0 0
        %1160 = vmatprep.subr.bf16.mxu0 0
        %1161 = vmatpush2.bf16.xpose.msra.mxu0 0
        %1162 = vmatprep.mubr.bf16.mxu0 0
        %1163 = vmatmul.mubr.bf16.gmra.mxu0 %v841
        %v1164 = vpop.f32.mrf.mxu0
        %v1165 = vadd.f32 0.0, %v1164
        %v1166 = vpop.f32.mrf.mxu0
        %v1167 = vpop.f32.mrf.mxu0
        %v1168 = vpop.f32.mrf.mxu0
        %1169 = vdwg.mxu0
        %v1170 = vmul.f32 %v885, 0.088388346
        %v1171 = vmul.f32 %v925, 0.088388346
        %v1172 = vmul.f32 %v965, 0.088388346
        %v1173 = vmul.f32 %v1005, 0.088388346
        %v1174 = vmul.f32 %v1045, 0.088388346
        %v1175 = vmul.f32 %v1085, 0.088388346
        %v1176 = vmul.f32 %v1125, 0.088388346
        %v1177 = vmul.f32 %v1165, 0.088388346
        %vm1178 = vcmask 130048
        %v1179 = vsel %vm1178, %v1170, -inf
        %1180 = vmax.xlane.f32.xlu0 %v1179
        %v1181 = vpop.xlane.xlu0 %1180
        %v1182 = vsel %vm1178, %v1171, -inf
        %1183 = vmax.xlane.f32.xlu0 %v1182
        %v1184 = vpop.xlane.xlu0 %1183
        %v1185 = vsel %vm1178, %v1172, -inf
        %1186 = vmax.xlane.f32.xlu0 %v1185
        %v1187 = vpop.xlane.xlu0 %1186
        %v1188 = vsel %vm1178, %v1173, -inf
        %1189 = vmax.xlane.f32.xlu0 %v1188
        %v1190 = vpop.xlane.xlu0 %1189
        %v1191 = vsel %vm1178, %v1174, -inf
        %1192 = vmax.xlane.f32.xlu0 %v1191
        %v1193 = vpop.xlane.xlu0 %1192
        %v1194 = vsel %vm1178, %v1175, -inf
        %1195 = vmax.xlane.f32.xlu0 %v1194
        %v1196 = vpop.xlane.xlu0 %1195
        %v1197 = vsel %vm1178, %v1176, -inf
        %1198 = vmax.xlane.f32.xlu0 %v1197
        %v1199 = vpop.xlane.xlu0 %1198
        %v1200 = vsel %vm1178, %v1177, -inf
        %1201 = vmax.xlane.f32.xlu0 %v1200
        %v1202 = vpop.xlane.xlu0 %1201
        %v1203 = vsub.f32 %v1170, %v1181
        %v1204 = vsub.f32 %v1171, %v1184
        %v1205 = vsub.f32 %v1172, %v1187
        %v1206 = vsub.f32 %v1173, %v1190
        %v1207 = vsub.f32 %v1174, %v1193
        %v1208 = vsub.f32 %v1175, %v1196
        %v1209 = vsub.f32 %v1176, %v1199
        %v1210 = vsub.f32 %v1177, %v1202
        %v1211 = vmul.f32 %v1203, 1.442695
        %v1212 = vpow.pop %v1211
        %v1213 = vmul.f32 %v1204, 1.442695
        %v1214 = vpow.pop %v1213
        %v1215 = vmul.f32 %v1205, 1.442695
        %v1216 = vpow.pop %v1215
        %v1217 = vmul.f32 %v1206, 1.442695
        %v1218 = vpow.pop %v1217
        %v1219 = vmul.f32 %v1207, 1.442695
        %v1220 = vpow.pop %v1219
        %v1221 = vmul.f32 %v1208, 1.442695
        %v1222 = vpow.pop %v1221
        %v1223 = vmul.f32 %v1209, 1.442695
        %v1224 = vpow.pop %v1223
        %v1225 = vmul.f32 %v1210, 1.442695
        %v1226 = vpow.pop %v1225
        %v1227 = vsel %vm1178, %v1212, 0.0
        %1228 = vadd.xlane.f32.xlu0 %v1227
        %v1229 = vpop.xlane.xlu0 %1228
        %v1230 = vsel %vm1178, %v1214, 0.0
        %1231 = vadd.xlane.f32.xlu0 %v1230
        %v1232 = vpop.xlane.xlu0 %1231
        %v1233 = vsel %vm1178, %v1216, 0.0
        %1234 = vadd.xlane.f32.xlu0 %v1233
        %v1235 = vpop.xlane.xlu0 %1234
        %v1236 = vsel %vm1178, %v1218, 0.0
        %1237 = vadd.xlane.f32.xlu0 %v1236
        %v1238 = vpop.xlane.xlu0 %1237
        %v1239 = vsel %vm1178, %v1220, 0.0
        %1240 = vadd.xlane.f32.xlu0 %v1239
        %v1241 = vpop.xlane.xlu0 %1240
        %v1242 = vsel %vm1178, %v1222, 0.0
        %1243 = vadd.xlane.f32.xlu0 %v1242
        %v1244 = vpop.xlane.xlu0 %1243
        %v1245 = vsel %vm1178, %v1224, 0.0
        %1246 = vadd.xlane.f32.xlu0 %v1245
        %v1247 = vpop.xlane.xlu0 %1246
        %v1248 = vsel %vm1178, %v1226, 0.0
        %1249 = vadd.xlane.f32.xlu0 %v1248
        %v1250 = vpop.xlane.xlu0 %1249
        %v1251 = vrcp.pop %v1229
        %v1252 = vrcp.pop %v1232
        %v1253 = vrcp.pop %v1235
        %v1254 = vrcp.pop %v1238
        %v1255 = vrcp.pop %v1241
        %v1256 = vrcp.pop %v1244
        %v1257 = vrcp.pop %v1247
        %v1258 = vrcp.pop %v1250
        %v1259 = vmul.f32 %v1212, %v1251
        %v1260 = vmul.f32 %v1214, %v1252
        %v1261 = vmul.f32 %v1216, %v1253
        %v1262 = vmul.f32 %v1218, %v1254
        %v1263 = vmul.f32 %v1220, %v1255
        %v1264 = vmul.f32 %v1222, %v1256
        %v1265 = vmul.f32 %v1224, %v1257
        %v1266 = vmul.f32 %v1226, %v1258
        %v1267 = vpack.c.bf16 %v1259, %v1259
        %v1268 = vpack.c.bf16 %v1260, %v1260
        %v1269 = vpack.c.bf16 %v1261, %v1261
        %v1270 = vpack.c.bf16 %v1262, %v1262
        %v1271 = vpack.c.bf16 %v1263, %v1263
        %v1272 = vpack.c.bf16 %v1264, %v1264
        %v1273 = vpack.c.bf16 %v1265, %v1265
        %v1274 = vpack.c.bf16 %v1266, %v1266
        %v1275 = vpack.c.bf16 %v762, %v758
        %v1276 = vpack.c.bf16 %v772, %v768
        %v1277 = vpack.c.bf16 %v782, %v778
        %v1278 = vpack.c.bf16 %v792, %v788
        %v1279 = vpack.c.bf16 %v802, %v798
        %v1280 = vpack.c.bf16 %v812, %v808
        %v1281 = vpack.c.bf16 %v822, %v818
        %v1282 = vpack.c.bf16 %v832, %v828
        %v1284 = vsel %vm1178, %v1267, 0
        %1286 = vmatprep.subr.bf16.mxu0 0
        %1287 = vmatpush1.bf16.msra.mxu0 0
        %1288 = vmatprep.subr.bf16.mxu0 0
        %1289 = vmatpush1.bf16.msra.mxu0 0
        %1290 = vmatprep.subr.bf16.mxu0 0
        %1291 = vmatpush1.bf16.msra.mxu0 0
        %1292 = vmatprep.subr.bf16.mxu0 0
        %1293 = vmatpush1.bf16.msra.mxu0 0
        %1294 = vmatprep.subr.bf16.mxu0 0
        %1295 = vmatpush1.bf16.msra.mxu0 0
        %1296 = vmatprep.subr.bf16.mxu0 0
        %1297 = vmatpush1.bf16.msra.mxu0 0
        %1298 = vmatprep.subr.bf16.mxu0 0
        %1299 = vmatpush1.bf16.msra.mxu0 0
        %1300 = vmatprep.subr.bf16.mxu0 0
        %1301 = vmatpush1.bf16.msra.mxu0 %v1275
        %1302 = vmatprep.subr.bf16.mxu0 0
        %1303 = vmatpush2.bf16.msra.mxu0 0
        %1304 = vmatprep.subr.bf16.mxu0 0
        %1305 = vmatpush2.bf16.msra.mxu0 0
        %1306 = vmatprep.subr.bf16.mxu0 0
        %1307 = vmatpush2.bf16.msra.mxu0 0
        %1308 = vmatprep.subr.bf16.mxu0 0
        %1309 = vmatpush2.bf16.msra.mxu0 0
        %1310 = vmatprep.subr.bf16.mxu0 0
        %1311 = vmatpush2.bf16.msra.mxu0 0
        %1312 = vmatprep.subr.bf16.mxu0 0
        %1313 = vmatpush2.bf16.msra.mxu0 0
        %1314 = vmatprep.subr.bf16.mxu0 0
        %1315 = vmatpush2.bf16.msra.mxu0 0
        %1316 = vmatprep.subr.bf16.mxu0 0
        %1317 = vmatpush2.bf16.msra.mxu0 0
        %1318 = vmatprep.mubr.bf16.mxu0 0
        %1319 = vmatmul.mubr.bf16.gmra.mxu0 %v1284
        %v1320 = vpop.f32.mrf.mxu0
        %v1321 = vadd.f32 0.0, %v1320
        %v1322 = vpop.f32.mrf.mxu0
        %v1323 = vpop.f32.mrf.mxu0
        %v1324 = vpop.f32.mrf.mxu0
        %1325 = vdwg.mxu0
        %v1327 = vsel %vm1178, %v1268, 0
        %1329 = vmatprep.subr.bf16.mxu0 0
        %1330 = vmatpush1.bf16.msra.mxu0 0
        %1331 = vmatprep.subr.bf16.mxu0 0
        %1332 = vmatpush1.bf16.msra.mxu0 0
        %1333 = vmatprep.subr.bf16.mxu0 0
        %1334 = vmatpush1.bf16.msra.mxu0 0
        %1335 = vmatprep.subr.bf16.mxu0 0
        %1336 = vmatpush1.bf16.msra.mxu0 0
        %1337 = vmatprep.subr.bf16.mxu0 0
        %1338 = vmatpush1.bf16.msra.mxu0 0
        %1339 = vmatprep.subr.bf16.mxu0 0
        %1340 = vmatpush1.bf16.msra.mxu0 0
        %1341 = vmatprep.subr.bf16.mxu0 0
        %1342 = vmatpush1.bf16.msra.mxu0 0
        %1343 = vmatprep.subr.bf16.mxu0 0
        %1344 = vmatpush1.bf16.msra.mxu0 %v1276
        %1345 = vmatprep.subr.bf16.mxu0 0
        %1346 = vmatpush2.bf16.msra.mxu0 0
        %1347 = vmatprep.subr.bf16.mxu0 0
        %1348 = vmatpush2.bf16.msra.mxu0 0
        %1349 = vmatprep.subr.bf16.mxu0 0
        %1350 = vmatpush2.bf16.msra.mxu0 0
        %1351 = vmatprep.subr.bf16.mxu0 0
        %1352 = vmatpush2.bf16.msra.mxu0 0
        %1353 = vmatprep.subr.bf16.mxu0 0
        %1354 = vmatpush2.bf16.msra.mxu0 0
        %1355 = vmatprep.subr.bf16.mxu0 0
        %1356 = vmatpush2.bf16.msra.mxu0 0
        %1357 = vmatprep.subr.bf16.mxu0 0
        %1358 = vmatpush2.bf16.msra.mxu0 0
        %1359 = vmatprep.subr.bf16.mxu0 0
        %1360 = vmatpush2.bf16.msra.mxu0 0
        %1361 = vmatprep.mubr.bf16.mxu0 0
        %1362 = vmatmul.mubr.bf16.gmra.mxu0 %v1327
        %v1363 = vpop.f32.mrf.mxu0
        %v1364 = vadd.f32 0.0, %v1363
        %v1365 = vpop.f32.mrf.mxu0
        %v1366 = vpop.f32.mrf.mxu0
        %v1367 = vpop.f32.mrf.mxu0
        %1368 = vdwg.mxu0
        %v1370 = vsel %vm1178, %v1269, 0
        %1372 = vmatprep.subr.bf16.mxu0 0
        %1373 = vmatpush1.bf16.msra.mxu0 0
        %1374 = vmatprep.subr.bf16.mxu0 0
        %1375 = vmatpush1.bf16.msra.mxu0 0
        %1376 = vmatprep.subr.bf16.mxu0 0
        %1377 = vmatpush1.bf16.msra.mxu0 0
        %1378 = vmatprep.subr.bf16.mxu0 0
        %1379 = vmatpush1.bf16.msra.mxu0 0
        %1380 = vmatprep.subr.bf16.mxu0 0
        %1381 = vmatpush1.bf16.msra.mxu0 0
        %1382 = vmatprep.subr.bf16.mxu0 0
        %1383 = vmatpush1.bf16.msra.mxu0 0
        %1384 = vmatprep.subr.bf16.mxu0 0
        %1385 = vmatpush1.bf16.msra.mxu0 0
        %1386 = vmatprep.subr.bf16.mxu0 0
        %1387 = vmatpush1.bf16.msra.mxu0 %v1277
        %1388 = vmatprep.subr.bf16.mxu0 0
        %1389 = vmatpush2.bf16.msra.mxu0 0
        %1390 = vmatprep.subr.bf16.mxu0 0
        %1391 = vmatpush2.bf16.msra.mxu0 0
        %1392 = vmatprep.subr.bf16.mxu0 0
        %1393 = vmatpush2.bf16.msra.mxu0 0
        %1394 = vmatprep.subr.bf16.mxu0 0
        %1395 = vmatpush2.bf16.msra.mxu0 0
        %1396 = vmatprep.subr.bf16.mxu0 0
        %1397 = vmatpush2.bf16.msra.mxu0 0
        %1398 = vmatprep.subr.bf16.mxu0 0
        %1399 = vmatpush2.bf16.msra.mxu0 0
        %1400 = vmatprep.subr.bf16.mxu0 0
        %1401 = vmatpush2.bf16.msra.mxu0 0
        %1402 = vmatprep.subr.bf16.mxu0 0
        %1403 = vmatpush2.bf16.msra.mxu0 0
        %1404 = vmatprep.mubr.bf16.mxu0 0
        %1405 = vmatmul.mubr.bf16.gmra.mxu0 %v1370
        %v1406 = vpop.f32.mrf.mxu0
        %v1407 = vadd.f32 0.0, %v1406
        %v1408 = vpop.f32.mrf.mxu0
        %v1409 = vpop.f32.mrf.mxu0
        %v1410 = vpop.f32.mrf.mxu0
        %1411 = vdwg.mxu0
        %v1413 = vsel %vm1178, %v1270, 0
        %1415 = vmatprep.subr.bf16.mxu0 0
        %1416 = vmatpush1.bf16.msra.mxu0 0
        %1417 = vmatprep.subr.bf16.mxu0 0
        %1418 = vmatpush1.bf16.msra.mxu0 0
        %1419 = vmatprep.subr.bf16.mxu0 0
        %1420 = vmatpush1.bf16.msra.mxu0 0
        %1421 = vmatprep.subr.bf16.mxu0 0
        %1422 = vmatpush1.bf16.msra.mxu0 0
        %1423 = vmatprep.subr.bf16.mxu0 0
        %1424 = vmatpush1.bf16.msra.mxu0 0
        %1425 = vmatprep.subr.bf16.mxu0 0
        %1426 = vmatpush1.bf16.msra.mxu0 0
        %1427 = vmatprep.subr.bf16.mxu0 0
        %1428 = vmatpush1.bf16.msra.mxu0 0
        %1429 = vmatprep.subr.bf16.mxu0 0
        %1430 = vmatpush1.bf16.msra.mxu0 %v1278
        %1431 = vmatprep.subr.bf16.mxu0 0
        %1432 = vmatpush2.bf16.msra.mxu0 0
        %1433 = vmatprep.subr.bf16.mxu0 0
        %1434 = vmatpush2.bf16.msra.mxu0 0
        %1435 = vmatprep.subr.bf16.mxu0 0
        %1436 = vmatpush2.bf16.msra.mxu0 0
        %1437 = vmatprep.subr.bf16.mxu0 0
        %1438 = vmatpush2.bf16.msra.mxu0 0
        %1439 = vmatprep.subr.bf16.mxu0 0
        %1440 = vmatpush2.bf16.msra.mxu0 0
        %1441 = vmatprep.subr.bf16.mxu0 0
        %1442 = vmatpush2.bf16.msra.mxu0 0
        %1443 = vmatprep.subr.bf16.mxu0 0
        %1444 = vmatpush2.bf16.msra.mxu0 0
        %1445 = vmatprep.subr.bf16.mxu0 0
        %1446 = vmatpush2.bf16.msra.mxu0 0
        %1447 = vmatprep.mubr.bf16.mxu0 0
        %1448 = vmatmul.mubr.bf16.gmra.mxu0 %v1413
        %v1449 = vpop.f32.mrf.mxu0
        %v1450 = vadd.f32 0.0, %v1449
        %v1451 = vpop.f32.mrf.mxu0
        %v1452 = vpop.f32.mrf.mxu0
        %v1453 = vpop.f32.mrf.mxu0
        %1454 = vdwg.mxu0
        %v1456 = vsel %vm1178, %v1271, 0
        %1458 = vmatprep.subr.bf16.mxu0 0
        %1459 = vmatpush1.bf16.msra.mxu0 0
        %1460 = vmatprep.subr.bf16.mxu0 0
        %1461 = vmatpush1.bf16.msra.mxu0 0
        %1462 = vmatprep.subr.bf16.mxu0 0
        %1463 = vmatpush1.bf16.msra.mxu0 0
        %1464 = vmatprep.subr.bf16.mxu0 0
        %1465 = vmatpush1.bf16.msra.mxu0 0
        %1466 = vmatprep.subr.bf16.mxu0 0
        %1467 = vmatpush1.bf16.msra.mxu0 0
        %1468 = vmatprep.subr.bf16.mxu0 0
        %1469 = vmatpush1.bf16.msra.mxu0 0
        %1470 = vmatprep.subr.bf16.mxu0 0
        %1471 = vmatpush1.bf16.msra.mxu0 0
        %1472 = vmatprep.subr.bf16.mxu0 0
        %1473 = vmatpush1.bf16.msra.mxu0 %v1279
        %1474 = vmatprep.subr.bf16.mxu0 0
        %1475 = vmatpush2.bf16.msra.mxu0 0
        %1476 = vmatprep.subr.bf16.mxu0 0
        %1477 = vmatpush2.bf16.msra.mxu0 0
        %1478 = vmatprep.subr.bf16.mxu0 0
        %1479 = vmatpush2.bf16.msra.mxu0 0
        %1480 = vmatprep.subr.bf16.mxu0 0
        %1481 = vmatpush2.bf16.msra.mxu0 0
        %1482 = vmatprep.subr.bf16.mxu0 0
        %1483 = vmatpush2.bf16.msra.mxu0 0
        %1484 = vmatprep.subr.bf16.mxu0 0
        %1485 = vmatpush2.bf16.msra.mxu0 0
        %1486 = vmatprep.subr.bf16.mxu0 0
        %1487 = vmatpush2.bf16.msra.mxu0 0
        %1488 = vmatprep.subr.bf16.mxu0 0
        %1489 = vmatpush2.bf16.msra.mxu0 0
        %1490 = vmatprep.mubr.bf16.mxu0 0
        %1491 = vmatmul.mubr.bf16.gmra.mxu0 %v1456
        %v1492 = vpop.f32.mrf.mxu0
        %v1493 = vadd.f32 0.0, %v1492
        %v1494 = vpop.f32.mrf.mxu0
        %v1495 = vpop.f32.mrf.mxu0
        %v1496 = vpop.f32.mrf.mxu0
        %1497 = vdwg.mxu0
        %v1499 = vsel %vm1178, %v1272, 0
        %1501 = vmatprep.subr.bf16.mxu0 0
        %1502 = vmatpush1.bf16.msra.mxu0 0
        %1503 = vmatprep.subr.bf16.mxu0 0
        %1504 = vmatpush1.bf16.msra.mxu0 0
        %1505 = vmatprep.subr.bf16.mxu0 0
        %1506 = vmatpush1.bf16.msra.mxu0 0
        %1507 = vmatprep.subr.bf16.mxu0 0
        %1508 = vmatpush1.bf16.msra.mxu0 0
        %1509 = vmatprep.subr.bf16.mxu0 0
        %1510 = vmatpush1.bf16.msra.mxu0 0
        %1511 = vmatprep.subr.bf16.mxu0 0
        %1512 = vmatpush1.bf16.msra.mxu0 0
        %1513 = vmatprep.subr.bf16.mxu0 0
        %1514 = vmatpush1.bf16.msra.mxu0 0
        %1515 = vmatprep.subr.bf16.mxu0 0
        %1516 = vmatpush1.bf16.msra.mxu0 %v1280
        %1517 = vmatprep.subr.bf16.mxu0 0
        %1518 = vmatpush2.bf16.msra.mxu0 0
        %1519 = vmatprep.subr.bf16.mxu0 0
        %1520 = vmatpush2.bf16.msra.mxu0 0
        %1521 = vmatprep.subr.bf16.mxu0 0
        %1522 = vmatpush2.bf16.msra.mxu0 0
        %1523 = vmatprep.subr.bf16.mxu0 0
        %1524 = vmatpush2.bf16.msra.mxu0 0
        %1525 = vmatprep.subr.bf16.mxu0 0
        %1526 = vmatpush2.bf16.msra.mxu0 0
        %1527 = vmatprep.subr.bf16.mxu0 0
        %1528 = vmatpush2.bf16.msra.mxu0 0
        %1529 = vmatprep.subr.bf16.mxu0 0
        %1530 = vmatpush2.bf16.msra.mxu0 0
        %1531 = vmatprep.subr.bf16.mxu0 0
        %1532 = vmatpush2.bf16.msra.mxu0 0
        %1533 = vmatprep.mubr.bf16.mxu0 0
        %1534 = vmatmul.mubr.bf16.gmra.mxu0 %v1499
        %v1535 = vpop.f32.mrf.mxu0
        %v1536 = vadd.f32 0.0, %v1535
        %v1537 = vpop.f32.mrf.mxu0
        %v1538 = vpop.f32.mrf.mxu0
        %v1539 = vpop.f32.mrf.mxu0
        %1540 = vdwg.mxu0
        %v1542 = vsel %vm1178, %v1273, 0
        %1544 = vmatprep.subr.bf16.mxu0 0
        %1545 = vmatpush1.bf16.msra.mxu0 0
        %1546 = vmatprep.subr.bf16.mxu0 0
        %1547 = vmatpush1.bf16.msra.mxu0 0
        %1548 = vmatprep.subr.bf16.mxu0 0
        %1549 = vmatpush1.bf16.msra.mxu0 0
        %1550 = vmatprep.subr.bf16.mxu0 0
        %1551 = vmatpush1.bf16.msra.mxu0 0
        %1552 = vmatprep.subr.bf16.mxu0 0
        %1553 = vmatpush1.bf16.msra.mxu0 0
        %1554 = vmatprep.subr.bf16.mxu0 0
        %1555 = vmatpush1.bf16.msra.mxu0 0
        %1556 = vmatprep.subr.bf16.mxu0 0
        %1557 = vmatpush1.bf16.msra.mxu0 0
        %1558 = vmatprep.subr.bf16.mxu0 0
        %1559 = vmatpush1.bf16.msra.mxu0 %v1281
        %1560 = vmatprep.subr.bf16.mxu0 0
        %1561 = vmatpush2.bf16.msra.mxu0 0
        %1562 = vmatprep.subr.bf16.mxu0 0
        %1563 = vmatpush2.bf16.msra.mxu0 0
        %1564 = vmatprep.subr.bf16.mxu0 0
        %1565 = vmatpush2.bf16.msra.mxu0 0
        %1566 = vmatprep.subr.bf16.mxu0 0
        %1567 = vmatpush2.bf16.msra.mxu0 0
        %1568 = vmatprep.subr.bf16.mxu0 0
        %1569 = vmatpush2.bf16.msra.mxu0 0
        %1570 = vmatprep.subr.bf16.mxu0 0
        %1571 = vmatpush2.bf16.msra.mxu0 0
        %1572 = vmatprep.subr.bf16.mxu0 0
        %1573 = vmatpush2.bf16.msra.mxu0 0
        %1574 = vmatprep.subr.bf16.mxu0 0
        %1575 = vmatpush2.bf16.msra.mxu0 0
        %1576 = vmatprep.mubr.bf16.mxu0 0
        %1577 = vmatmul.mubr.bf16.gmra.mxu0 %v1542
        %v1578 = vpop.f32.mrf.mxu0
        %v1579 = vadd.f32 0.0, %v1578
        %v1580 = vpop.f32.mrf.mxu0
        %v1581 = vpop.f32.mrf.mxu0
        %v1582 = vpop.f32.mrf.mxu0
        %1583 = vdwg.mxu0
        %v1585 = vsel %vm1178, %v1274, 0
        %1587 = vmatprep.subr.bf16.mxu0 0
        %1588 = vmatpush1.bf16.msra.mxu0 0
        %1589 = vmatprep.subr.bf16.mxu0 0
        %1590 = vmatpush1.bf16.msra.mxu0 0
        %1591 = vmatprep.subr.bf16.mxu0 0
        %1592 = vmatpush1.bf16.msra.mxu0 0
        %1593 = vmatprep.subr.bf16.mxu0 0
        %1594 = vmatpush1.bf16.msra.mxu0 0
        %1595 = vmatprep.subr.bf16.mxu0 0
        %1596 = vmatpush1.bf16.msra.mxu0 0
        %1597 = vmatprep.subr.bf16.mxu0 0
        %1598 = vmatpush1.bf16.msra.mxu0 0
        %1599 = vmatprep.subr.bf16.mxu0 0
        %1600 = vmatpush1.bf16.msra.mxu0 0
        %1601 = vmatprep.subr.bf16.mxu0 0
        %1602 = vmatpush1.bf16.msra.mxu0 %v1282
        %1603 = vmatprep.subr.bf16.mxu0 0
        %1604 = vmatpush2.bf16.msra.mxu0 0
        %1605 = vmatprep.subr.bf16.mxu0 0
        %1606 = vmatpush2.bf16.msra.mxu0 0
        %1607 = vmatprep.subr.bf16.mxu0 0
        %1608 = vmatpush2.bf16.msra.mxu0 0
        %1609 = vmatprep.subr.bf16.mxu0 0
        %1610 = vmatpush2.bf16.msra.mxu0 0
        %1611 = vmatprep.subr.bf16.mxu0 0
        %1612 = vmatpush2.bf16.msra.mxu0 0
        %1613 = vmatprep.subr.bf16.mxu0 0
        %1614 = vmatpush2.bf16.msra.mxu0 0
        %1615 = vmatprep.subr.bf16.mxu0 0
        %1616 = vmatpush2.bf16.msra.mxu0 0
        %1617 = vmatprep.subr.bf16.mxu0 0
        %1618 = vmatpush2.bf16.msra.mxu0 0
        %1619 = vmatprep.mubr.bf16.mxu0 0
        %1620 = vmatmul.mubr.bf16.gmra.mxu0 %v1585
        %v1621 = vpop.f32.mrf.mxu0
        %v1622 = vadd.f32 0.0, %v1621
        %v1623 = vpop.f32.mrf.mxu0
        %v1624 = vpop.f32.mrf.mxu0
        %v1625 = vpop.f32.mrf.mxu0
        %1626 = vdwg.mxu0
        %v1627 = vrot.slane %v1321, 4
        %v1628 = vadd.f32 %v1321, %v1627
        %v1629 = vrot.slane %v1628, 2
        %v1630 = vadd.f32 %v1628, %v1629
        %v1631 = vrot.slane %v1630, 1
        %v1632 = vadd.f32 %v1630, %v1631
        %v1633 = vrot.slane %v1364, 4
        %v1634 = vadd.f32 %v1364, %v1633
        %v1635 = vrot.slane %v1634, 2
        %v1636 = vadd.f32 %v1634, %v1635
        %v1637 = vrot.slane %v1636, 1
        %v1638 = vadd.f32 %v1636, %v1637
        %v1639 = vrot.slane %v1407, 4
        %v1640 = vadd.f32 %v1407, %v1639
        %v1641 = vrot.slane %v1640, 2
        %v1642 = vadd.f32 %v1640, %v1641
        %v1643 = vrot.slane %v1642, 1
        %v1644 = vadd.f32 %v1642, %v1643
        %v1645 = vrot.slane %v1450, 4
        %v1646 = vadd.f32 %v1450, %v1645
        %v1647 = vrot.slane %v1646, 2
        %v1648 = vadd.f32 %v1646, %v1647
        %v1649 = vrot.slane %v1648, 1
        %v1650 = vadd.f32 %v1648, %v1649
        %v1651 = vrot.slane %v1493, 4
        %v1652 = vadd.f32 %v1493, %v1651
        %v1653 = vrot.slane %v1652, 2
        %v1654 = vadd.f32 %v1652, %v1653
        %v1655 = vrot.slane %v1654, 1
        %v1656 = vadd.f32 %v1654, %v1655
        %v1657 = vrot.slane %v1536, 4
        %v1658 = vadd.f32 %v1536, %v1657
        %v1659 = vrot.slane %v1658, 2
        %v1660 = vadd.f32 %v1658, %v1659
        %v1661 = vrot.slane %v1660, 1
        %v1662 = vadd.f32 %v1660, %v1661
        %v1663 = vrot.slane %v1579, 4
        %v1664 = vadd.f32 %v1579, %v1663
        %v1665 = vrot.slane %v1664, 2
        %v1666 = vadd.f32 %v1664, %v1665
        %v1667 = vrot.slane %v1666, 1
        %v1668 = vadd.f32 %v1666, %v1667
        %v1669 = vrot.slane %v1622, 4
        %v1670 = vadd.f32 %v1622, %v1669
        %v1671 = vrot.slane %v1670, 2
        %v1672 = vadd.f32 %v1670, %v1671
        %v1673 = vrot.slane %v1672, 1
        %v1674 = vadd.f32 %v1672, %v1673
        %v1675 = vrcp.pop 8.0
        %v1676 = vmul.f32 %v1632, %v1675
        %v1677 = vmul.f32 %v1638, %v1675
        %v1678 = vmul.f32 %v1644, %v1675
        %v1679 = vmul.f32 %v1650, %v1675
        %v1680 = vmul.f32 %v1656, %v1675
        %v1681 = vmul.f32 %v1662, %v1675
        %v1682 = vmul.f32 %v1668, %v1675
        %v1683 = vmul.f32 %v1674, %v1675
        %v1684 = vrot.slane %v432, 4
        %v1685 = vadd.f32 %v432, %v1684
        %v1686 = vrot.slane %v1685, 2
        %v1687 = vadd.f32 %v1685, %v1686
        %v1688 = vrot.slane %v1687, 1
        %v1689 = vadd.f32 %v1687, %v1688
        %v1690 = vrot.slane %v433, 4
        %v1691 = vadd.f32 %v433, %v1690
        %v1692 = vrot.slane %v1691, 2
        %v1693 = vadd.f32 %v1691, %v1692
        %v1694 = vrot.slane %v1693, 1
        %v1695 = vadd.f32 %v1693, %v1694
        %v1696 = vrot.slane %v434, 4
        %v1697 = vadd.f32 %v434, %v1696
        %v1698 = vrot.slane %v1697, 2
        %v1699 = vadd.f32 %v1697, %v1698
        %v1700 = vrot.slane %v1699, 1
        %v1701 = vadd.f32 %v1699, %v1700
        %v1702 = vrot.slane %v435, 4
        %v1703 = vadd.f32 %v435, %v1702
        %v1704 = vrot.slane %v1703, 2
        %v1705 = vadd.f32 %v1703, %v1704
        %v1706 = vrot.slane %v1705, 1
        %v1707 = vadd.f32 %v1705, %v1706
        %v1708 = vrot.slane %v436, 4
        %v1709 = vadd.f32 %v436, %v1708
        %v1710 = vrot.slane %v1709, 2
        %v1711 = vadd.f32 %v1709, %v1710
        %v1712 = vrot.slane %v1711, 1
        %v1713 = vadd.f32 %v1711, %v1712
        %v1714 = vrot.slane %v437, 4
        %v1715 = vadd.f32 %v437, %v1714
        %v1716 = vrot.slane %v1715, 2
        %v1717 = vadd.f32 %v1715, %v1716
        %v1718 = vrot.slane %v1717, 1
        %v1719 = vadd.f32 %v1717, %v1718
        %v1720 = vrot.slane %v438, 4
        %v1721 = vadd.f32 %v438, %v1720
        %v1722 = vrot.slane %v1721, 2
        %v1723 = vadd.f32 %v1721, %v1722
        %v1724 = vrot.slane %v1723, 1
        %v1725 = vadd.f32 %v1723, %v1724
        %v1726 = vrot.slane %v439, 4
        %v1727 = vadd.f32 %v439, %v1726
        %v1728 = vrot.slane %v1727, 2
        %v1729 = vadd.f32 %v1727, %v1728
        %v1730 = vrot.slane %v1729, 1
        %v1731 = vadd.f32 %v1729, %v1730
        %v1732 = vmul.f32 %v1689, %v1675
        %v1733 = vmul.f32 %v1695, %v1675
        %v1734 = vmul.f32 %v1701, %v1675
        %v1735 = vmul.f32 %v1707, %v1675
        %v1736 = vmul.f32 %v1713, %v1675
        %v1737 = vmul.f32 %v1719, %v1675
        %v1738 = vmul.f32 %v1725, %v1675
        %v1739 = vmul.f32 %v1731, %v1675
        %v1740 = vld [vmem:[#allocation7] sm:$0xff]
        %v1741 = vld [vmem:[#allocation7 + $0x8] sm:$0xff]
        %v1742 = vld [vmem:[#allocation7 + $0x10] sm:$0xff]
        %v1743 = vld [vmem:[#allocation7 + $0x18] sm:$0xff]
        %v1744 = vld [vmem:[#allocation7 + $0x20] sm:$0xff]
        %v1745 = vld [vmem:[#allocation7 + $0x28] sm:$0xff]
        %v1746 = vld [vmem:[#allocation7 + $0x30] sm:$0xff]
        %v1747 = vld [vmem:[#allocation7 + $0x38] sm:$0xff]
        %v1748 = vld [vmem:[#allocation7 + $0x40] sm:$0xff]
        %v1749 = vld [vmem:[#allocation7 + $0x48] sm:$0xff]
        %v1750 = vld [vmem:[#allocation7 + $0x50] sm:$0xff]
        %v1751 = vld [vmem:[#allocation7 + $0x58] sm:$0xff]
        %v1752 = vld [vmem:[#allocation7 + $0x60] sm:$0xff]
        %v1753 = vld [vmem:[#allocation7 + $0x68] sm:$0xff]
        %v1754 = vld [vmem:[#allocation7 + $0x70] sm:$0xff]
        %v1755 = vld [vmem:[#allocation7 + $0x78] sm:$0xff]
        %v1756 = vld [vmem:[#allocation7 + $0x80] sm:$0xff]
        %v1757 = vld [vmem:[#allocation7 + $0x88] sm:$0xff]
        %v1758 = vld [vmem:[#allocation7 + $0x90] sm:$0xff]
        %v1759 = vld [vmem:[#allocation7 + $0x98] sm:$0xff]
        %v1760 = vld [vmem:[#allocation7 + $0xa0] sm:$0xff]
        %v1761 = vld [vmem:[#allocation7 + $0xa8] sm:$0xff]
        %v1762 = vld [vmem:[#allocation7 + $0xb0] sm:$0xff]
        %v1763 = vld [vmem:[#allocation7 + $0xb8] sm:$0xff]
        %v1764 = vld [vmem:[#allocation7 + $0xc0] sm:$0xff]
        %v1765 = vld [vmem:[#allocation7 + $0xc8] sm:$0xff]
        %v1766 = vld [vmem:[#allocation7 + $0xd0] sm:$0xff]
        %v1767 = vld [vmem:[#allocation7 + $0xd8] sm:$0xff]
        %v1768 = vld [vmem:[#allocation7 + $0xe0] sm:$0xff]
        %v1769 = vld [vmem:[#allocation7 + $0xe8] sm:$0xff]
        %v1770 = vld [vmem:[#allocation7 + $0xf0] sm:$0xff]
        %v1771 = vld [vmem:[#allocation7 + $0xf8] sm:$0xff]
        %v1772 = vld [vmem:[#allocation7 + $0x100] sm:$0xff]
        %v1773 = vld [vmem:[#allocation7 + $0x108] sm:$0xff]
        %v1774 = vld [vmem:[#allocation7 + $0x110] sm:$0xff]
        %v1775 = vld [vmem:[#allocation7 + $0x118] sm:$0xff]
        %v1776 = vld [vmem:[#allocation7 + $0x120] sm:$0xff]
        %v1777 = vld [vmem:[#allocation7 + $0x128] sm:$0xff]
        %v1778 = vld [vmem:[#allocation7 + $0x130] sm:$0xff]
        %v1779 = vld [vmem:[#allocation7 + $0x138] sm:$0xff]
        %v1780 = vld [vmem:[#allocation7 + $0x140] sm:$0xff]
        %v1781 = vld [vmem:[#allocation7 + $0x148] sm:$0xff]
        %v1782 = vld [vmem:[#allocation7 + $0x150] sm:$0xff]
        %v1783 = vld [vmem:[#allocation7 + $0x158] sm:$0xff]
        %v1784 = vld [vmem:[#allocation7 + $0x160] sm:$0xff]
        %v1785 = vld [vmem:[#allocation7 + $0x168] sm:$0xff]
        %v1786 = vld [vmem:[#allocation7 + $0x170] sm:$0xff]
        %v1787 = vld [vmem:[#allocation7 + $0x178] sm:$0xff]
        %v1788 = vld [vmem:[#allocation7 + $0x180] sm:$0xff]
        %v1789 = vld [vmem:[#allocation7 + $0x188] sm:$0xff]
        %v1790 = vld [vmem:[#allocation7 + $0x190] sm:$0xff]
        %v1791 = vld [vmem:[#allocation7 + $0x198] sm:$0xff]
        %v1792 = vld [vmem:[#allocation7 + $0x1a0] sm:$0xff]
        %v1793 = vld [vmem:[#allocation7 + $0x1a8] sm:$0xff]
        %v1794 = vld [vmem:[#allocation7 + $0x1b0] sm:$0xff]
        %v1795 = vld [vmem:[#allocation7 + $0x1b8] sm:$0xff]
        %v1796 = vld [vmem:[#allocation7 + $0x1c0] sm:$0xff]
        %v1797 = vld [vmem:[#allocation7 + $0x1c8] sm:$0xff]
        %v1798 = vld [vmem:[#allocation7 + $0x1d0] sm:$0xff]
        %v1799 = vld [vmem:[#allocation7 + $0x1d8] sm:$0xff]
        %v1800 = vld [vmem:[#allocation7 + $0x1e0] sm:$0xff]
        %v1801 = vld [vmem:[#allocation7 + $0x1e8] sm:$0xff]
        %v1802 = vld [vmem:[#allocation7 + $0x1f0] sm:$0xff]
        %v1803 = vld [vmem:[#allocation7 + $0x1f8] sm:$0xff]
        %v1804 = vpack.c.bf16 %v1676, %v1676
        %v1805 = vpack.c.bf16 %v1677, %v1677
        %v1806 = vpack.c.bf16 %v1678, %v1678
        %v1807 = vpack.c.bf16 %v1679, %v1679
        %v1808 = vpack.c.bf16 %v1680, %v1680
        %v1809 = vpack.c.bf16 %v1681, %v1681
        %v1810 = vpack.c.bf16 %v1682, %v1682
        %v1811 = vpack.c.bf16 %v1683, %v1683
        %v1812 = vpack.c.bf16 %v1732, %v1732
        %v1813 = vpack.c.bf16 %v1733, %v1733
        %v1814 = vpack.c.bf16 %v1734, %v1734
        %v1815 = vpack.c.bf16 %v1735, %v1735
        %v1816 = vpack.c.bf16 %v1736, %v1736
        %v1817 = vpack.c.bf16 %v1737, %v1737
        %v1818 = vpack.c.bf16 %v1738, %v1738
        %v1819 = vpack.c.bf16 %v1739, %v1739
        %v1828 = vunpack.c.l.b16 %v1812
        %v1829 = vunpack.c.l.b16 %v1813
        %v1830 = vunpack.c.l.b16 %v1814
        %v1831 = vunpack.c.l.b16 %v1815
        %v1832 = vunpack.c.l.b16 %v1816
        %v1833 = vunpack.c.l.b16 %v1817
        %v1834 = vunpack.c.l.b16 %v1818
        %v1835 = vunpack.c.l.b16 %v1819
        %vm1836 = vcmask 1041409
        %v1837 = vsel %vm1836, %v1829, %v1828
        %vm1838 = vcmask 1042434
        %v1839 = vsel %vm1838, %v1830, %v1837
        %vm1840 = vcmask 1043459
        %v1841 = vsel %vm1840, %v1831, %v1839
        %vm1842 = vcmask 1044484
        %v1843 = vsel %vm1842, %v1832, %v1841
        %vm1844 = vcmask 1045509
        %v1845 = vsel %vm1844, %v1833, %v1843
        %vm1846 = vcmask 1046534
        %v1847 = vsel %vm1846, %v1834, %v1845
        %vm1848 = vcmask 1047559
        %v1849 = vsel %vm1848, %v1835, %v1847
        %v1850 = vpack.c.b16 %v1849, %v1849
        %v1884 = vunpack.c.l.b16 %v1772
        %v1885 = vunpack.c.h.b16 %v1772
        %v1886 = vunpack.c.l.b16 %v1773
        %v1887 = vunpack.c.h.b16 %v1773
        %v1888 = vunpack.c.l.b16 %v1774
        %v1889 = vunpack.c.h.b16 %v1774
        %v1890 = vunpack.c.l.b16 %v1775
        %v1891 = vunpack.c.h.b16 %v1775
        %v1892 = vunpack.c.l.b16 %v1776
        %v1893 = vunpack.c.h.b16 %v1776
        %v1894 = vunpack.c.l.b16 %v1777
        %v1895 = vunpack.c.h.b16 %v1777
        %v1896 = vunpack.c.l.b16 %v1778
        %v1897 = vunpack.c.h.b16 %v1778
        %v1898 = vunpack.c.l.b16 %v1779
        %v1899 = vunpack.c.h.b16 %v1779
        %v1900 = vunpack.c.l.b16 %v1780
        %v1901 = vunpack.c.h.b16 %v1780
        %v1902 = vunpack.c.l.b16 %v1781
        %v1903 = vunpack.c.h.b16 %v1781
        %v1904 = vunpack.c.l.b16 %v1782
        %v1905 = vunpack.c.h.b16 %v1782
        %v1906 = vunpack.c.l.b16 %v1783
        %v1907 = vunpack.c.h.b16 %v1783
        %v1908 = vunpack.c.l.b16 %v1784
        %v1909 = vunpack.c.h.b16 %v1784
        %v1910 = vunpack.c.l.b16 %v1785
        %v1911 = vunpack.c.h.b16 %v1785
        %v1912 = vunpack.c.l.b16 %v1786
        %v1913 = vunpack.c.h.b16 %v1786
        %v1914 = vunpack.c.l.b16 %v1787
        %v1915 = vunpack.c.h.b16 %v1787
        %v1916 = vunpack.c.l.b16 %v1788
        %v1917 = vunpack.c.h.b16 %v1788
        %v1918 = vunpack.c.l.b16 %v1789
        %v1919 = vunpack.c.h.b16 %v1789
        %v1920 = vunpack.c.l.b16 %v1790
        %v1921 = vunpack.c.h.b16 %v1790
        %v1922 = vunpack.c.l.b16 %v1791
        %v1923 = vunpack.c.h.b16 %v1791
        %v1924 = vunpack.c.l.b16 %v1792
        %v1925 = vunpack.c.h.b16 %v1792
        %v1926 = vunpack.c.l.b16 %v1793
        %v1927 = vunpack.c.h.b16 %v1793
        %v1928 = vunpack.c.l.b16 %v1794
        %v1929 = vunpack.c.h.b16 %v1794
        %v1930 = vunpack.c.l.b16 %v1795
        %v1931 = vunpack.c.h.b16 %v1795
        %v1932 = vunpack.c.l.b16 %v1796
        %v1933 = vunpack.c.h.b16 %v1796
        %v1934 = vunpack.c.l.b16 %v1797
        %v1935 = vunpack.c.h.b16 %v1797
        %v1936 = vunpack.c.l.b16 %v1798
        %v1937 = vunpack.c.h.b16 %v1798
        %v1938 = vunpack.c.l.b16 %v1799
        %v1939 = vunpack.c.h.b16 %v1799
        %v1940 = vunpack.c.l.b16 %v1800
        %v1941 = vunpack.c.h.b16 %v1800
        %v1942 = vunpack.c.l.b16 %v1801
        %v1943 = vunpack.c.h.b16 %v1801
        %v1944 = vunpack.c.l.b16 %v1802
        %v1945 = vunpack.c.h.b16 %v1802
        %v1946 = vunpack.c.l.b16 %v1803
        %v1947 = vunpack.c.h.b16 %v1803
        %v1948 = vpack.c.b16 %v1888, %v1884
        %v1949 = vpack.c.b16 %v1889, %v1885
        %v1950 = vpack.c.b16 %v1890, %v1886
        %v1951 = vpack.c.b16 %v1891, %v1887
        %v1952 = vpack.c.b16 %v1896, %v1892
        %v1953 = vpack.c.b16 %v1897, %v1893
        %v1954 = vpack.c.b16 %v1898, %v1894
        %v1955 = vpack.c.b16 %v1899, %v1895
        %v1956 = vpack.c.b16 %v1904, %v1900
        %v1957 = vpack.c.b16 %v1905, %v1901
        %v1958 = vpack.c.b16 %v1906, %v1902
        %v1959 = vpack.c.b16 %v1907, %v1903
        %v1960 = vpack.c.b16 %v1912, %v1908
        %v1961 = vpack.c.b16 %v1913, %v1909
        %v1962 = vpack.c.b16 %v1914, %v1910
        %v1963 = vpack.c.b16 %v1915, %v1911
        %v1964 = vpack.c.b16 %v1920, %v1916
        %v1965 = vpack.c.b16 %v1921, %v1917
        %v1966 = vpack.c.b16 %v1922, %v1918
        %v1967 = vpack.c.b16 %v1923, %v1919
        %v1968 = vpack.c.b16 %v1928, %v1924
        %v1969 = vpack.c.b16 %v1929, %v1925
        %v1970 = vpack.c.b16 %v1930, %v1926
        %v1971 = vpack.c.b16 %v1931, %v1927
        %v1972 = vpack.c.b16 %v1936, %v1932
        %v1973 = vpack.c.b16 %v1937, %v1933
        %v1974 = vpack.c.b16 %v1938, %v1934
        %v1975 = vpack.c.b16 %v1939, %v1935
        %v1976 = vpack.c.b16 %v1944, %v1940
        %v1977 = vpack.c.b16 %v1945, %v1941
        %v1978 = vpack.c.b16 %v1946, %v1942
        %v1979 = vpack.c.b16 %v1947, %v1943
        %2012 = vmatprep.subr.bf16.mxu0 %v1977
        %2013 = vmatpush1.bf16.msra.mxu0 %v1976
        %2014 = vmatprep.subr.bf16.mxu0 %v1973
        %2015 = vmatpush1.bf16.msra.mxu0 %v1972
        %2016 = vmatprep.subr.bf16.mxu0 %v1969
        %2017 = vmatpush1.bf16.msra.mxu0 %v1968
        %2018 = vmatprep.subr.bf16.mxu0 %v1965
        %2019 = vmatpush1.bf16.msra.mxu0 %v1964
        %2020 = vmatprep.subr.bf16.mxu0 %v1961
        %2021 = vmatpush1.bf16.msra.mxu0 %v1960
        %2022 = vmatprep.subr.bf16.mxu0 %v1957
        %2023 = vmatpush1.bf16.msra.mxu0 %v1956
        %2024 = vmatprep.subr.bf16.mxu0 %v1953
        %2025 = vmatpush1.bf16.msra.mxu0 %v1952
        %2026 = vmatprep.subr.bf16.mxu0 %v1949
        %2027 = vmatpush1.bf16.msra.mxu0 %v1948
        %2028 = vmatprep.subr.bf16.mxu0 0
        %2029 = vmatpush2.bf16.msra.mxu0 0
        %2030 = vmatprep.subr.bf16.mxu0 0
        %2031 = vmatpush2.bf16.msra.mxu0 0
        %2032 = vmatprep.subr.bf16.mxu0 0
        %2033 = vmatpush2.bf16.msra.mxu0 0
        %2034 = vmatprep.subr.bf16.mxu0 0
        %2035 = vmatpush2.bf16.msra.mxu0 0
        %2036 = vmatprep.subr.bf16.mxu0 0
        %2037 = vmatpush2.bf16.msra.mxu0 0
        %2038 = vmatprep.subr.bf16.mxu0 0
        %2039 = vmatpush2.bf16.msra.mxu0 0
        %2040 = vmatprep.subr.bf16.mxu0 0
        %2041 = vmatpush2.bf16.msra.mxu0 0
        %2042 = vmatprep.subr.bf16.mxu0 0
        %2043 = vmatpush2.bf16.msra.mxu0 0
        %2044 = vmatprep.mubr.bf16.mxu0 0
        %2045 = vmatmul.mubr.bf16.gmra.mxu0 %v1850
        %v2046 = vpop.f32.mrf.mxu0
        %v2047 = vadd.f32 0.0, %v2046
        %v2048 = vpop.f32.mrf.mxu0
        %v2049 = vadd.f32 0.0, %v2048
        %v2050 = vpop.f32.mrf.mxu0
        %v2051 = vpop.f32.mrf.mxu0
        %2052 = vdwg.mxu0
        %2053 = vmatprep.subr.bf16.mxu0 %v1979
        %2054 = vmatpush1.bf16.msra.mxu0 %v1978
        %2055 = vmatprep.subr.bf16.mxu0 %v1975
        %2056 = vmatpush1.bf16.msra.mxu0 %v1974
        %2057 = vmatprep.subr.bf16.mxu0 %v1971
        %2058 = vmatpush1.bf16.msra.mxu0 %v1970
        %2059 = vmatprep.subr.bf16.mxu0 %v1967
        %2060 = vmatpush1.bf16.msra.mxu0 %v1966
        %2061 = vmatprep.subr.bf16.mxu0 %v1963
        %2062 = vmatpush1.bf16.msra.mxu0 %v1962
        %2063 = vmatprep.subr.bf16.mxu0 %v1959
        %2064 = vmatpush1.bf16.msra.mxu0 %v1958
        %2065 = vmatprep.subr.bf16.mxu0 %v1955
        %2066 = vmatpush1.bf16.msra.mxu0 %v1954
        %2067 = vmatprep.subr.bf16.mxu0 %v1951
        %2068 = vmatpush1.bf16.msra.mxu0 %v1950
        %2069 = vmatprep.subr.bf16.mxu0 0
        %2070 = vmatpush2.bf16.msra.mxu0 0
        %2071 = vmatprep.subr.bf16.mxu0 0
        %2072 = vmatpush2.bf16.msra.mxu0 0
        %2073 = vmatprep.subr.bf16.mxu0 0
        %2074 = vmatpush2.bf16.msra.mxu0 0
        %2075 = vmatprep.subr.bf16.mxu0 0
        %2076 = vmatpush2.bf16.msra.mxu0 0
        %2077 = vmatprep.subr.bf16.mxu0 0
        %2078 = vmatpush2.bf16.msra.mxu0 0
        %2079 = vmatprep.subr.bf16.mxu0 0
        %2080 = vmatpush2.bf16.msra.mxu0 0
        %2081 = vmatprep.subr.bf16.mxu0 0
        %2082 = vmatpush2.bf16.msra.mxu0 0
        %2083 = vmatprep.subr.bf16.mxu0 0
        %2084 = vmatpush2.bf16.msra.mxu0 0
        %2085 = vmatprep.mubr.bf16.mxu0 0
        %2086 = vmatmul.mubr.bf16.gmra.mxu0 %v1850
        %v2087 = vpop.f32.mrf.mxu0
        %v2088 = vadd.f32 0.0, %v2087
        %v2089 = vpop.f32.mrf.mxu0
        %v2090 = vadd.f32 0.0, %v2089
        %v2091 = vpop.f32.mrf.mxu0
        %v2092 = vpop.f32.mrf.mxu0
        %2093 = vdwg.mxu0
        %v2102 = vunpack.c.l.b16 %v1804
        %v2103 = vunpack.c.l.b16 %v1805
        %v2104 = vunpack.c.l.b16 %v1806
        %v2105 = vunpack.c.l.b16 %v1807
        %v2106 = vunpack.c.l.b16 %v1808
        %v2107 = vunpack.c.l.b16 %v1809
        %v2108 = vunpack.c.l.b16 %v1810
        %v2109 = vunpack.c.l.b16 %v1811
        %v2110 = vsel %vm1836, %v2103, %v2102
        %v2111 = vsel %vm1838, %v2104, %v2110
        %v2112 = vsel %vm1840, %v2105, %v2111
        %v2113 = vsel %vm1842, %v2106, %v2112
        %v2114 = vsel %vm1844, %v2107, %v2113
        %v2115 = vsel %vm1846, %v2108, %v2114
        %v2116 = vsel %vm1848, %v2109, %v2115
        %v2117 = vpack.c.b16 %v2116, %v2116
        %v2151 = vunpack.c.l.b16 %v1740
        %v2152 = vunpack.c.h.b16 %v1740
        %v2153 = vunpack.c.l.b16 %v1741
        %v2154 = vunpack.c.h.b16 %v1741
        %v2155 = vunpack.c.l.b16 %v1742
        %v2156 = vunpack.c.h.b16 %v1742
        %v2157 = vunpack.c.l.b16 %v1743
        %v2158 = vunpack.c.h.b16 %v1743
        %v2159 = vunpack.c.l.b16 %v1744
        %v2160 = vunpack.c.h.b16 %v1744
        %v2161 = vunpack.c.l.b16 %v1745
        %v2162 = vunpack.c.h.b16 %v1745
        %v2163 = vunpack.c.l.b16 %v1746
        %v2164 = vunpack.c.h.b16 %v1746
        %v2165 = vunpack.c.l.b16 %v1747
        %v2166 = vunpack.c.h.b16 %v1747
        %v2167 = vunpack.c.l.b16 %v1748
        %v2168 = vunpack.c.h.b16 %v1748
        %v2169 = vunpack.c.l.b16 %v1749
        %v2170 = vunpack.c.h.b16 %v1749
        %v2171 = vunpack.c.l.b16 %v1750
        %v2172 = vunpack.c.h.b16 %v1750
        %v2173 = vunpack.c.l.b16 %v1751
        %v2174 = vunpack.c.h.b16 %v1751
        %v2175 = vunpack.c.l.b16 %v1752
        %v2176 = vunpack.c.h.b16 %v1752
        %v2177 = vunpack.c.l.b16 %v1753
        %v2178 = vunpack.c.h.b16 %v1753
        %v2179 = vunpack.c.l.b16 %v1754
        %v2180 = vunpack.c.h.b16 %v1754
        %v2181 = vunpack.c.l.b16 %v1755
        %v2182 = vunpack.c.h.b16 %v1755
        %v2183 = vunpack.c.l.b16 %v1756
        %v2184 = vunpack.c.h.b16 %v1756
        %v2185 = vunpack.c.l.b16 %v1757
        %v2186 = vunpack.c.h.b16 %v1757
        %v2187 = vunpack.c.l.b16 %v1758
        %v2188 = vunpack.c.h.b16 %v1758
        %v2189 = vunpack.c.l.b16 %v1759
        %v2190 = vunpack.c.h.b16 %v1759
        %v2191 = vunpack.c.l.b16 %v1760
        %v2192 = vunpack.c.h.b16 %v1760
        %v2193 = vunpack.c.l.b16 %v1761
        %v2194 = vunpack.c.h.b16 %v1761
        %v2195 = vunpack.c.l.b16 %v1762
        %v2196 = vunpack.c.h.b16 %v1762
        %v2197 = vunpack.c.l.b16 %v1763
        %v2198 = vunpack.c.h.b16 %v1763
        %v2199 = vunpack.c.l.b16 %v1764
        %v2200 = vunpack.c.h.b16 %v1764
        %v2201 = vunpack.c.l.b16 %v1765
        %v2202 = vunpack.c.h.b16 %v1765
        %v2203 = vunpack.c.l.b16 %v1766
        %v2204 = vunpack.c.h.b16 %v1766
        %v2205 = vunpack.c.l.b16 %v1767
        %v2206 = vunpack.c.h.b16 %v1767
        %v2207 = vunpack.c.l.b16 %v1768
        %v2208 = vunpack.c.h.b16 %v1768
        %v2209 = vunpack.c.l.b16 %v1769
        %v2210 = vunpack.c.h.b16 %v1769
        %v2211 = vunpack.c.l.b16 %v1770
        %v2212 = vunpack.c.h.b16 %v1770
        %v2213 = vunpack.c.l.b16 %v1771
        %v2214 = vunpack.c.h.b16 %v1771
        %v2215 = vpack.c.b16 %v2155, %v2151
        %v2216 = vpack.c.b16 %v2156, %v2152
        %v2217 = vpack.c.b16 %v2157, %v2153
        %v2218 = vpack.c.b16 %v2158, %v2154
        %v2219 = vpack.c.b16 %v2163, %v2159
        %v2220 = vpack.c.b16 %v2164, %v2160
        %v2221 = vpack.c.b16 %v2165, %v2161
        %v2222 = vpack.c.b16 %v2166, %v2162
        %v2223 = vpack.c.b16 %v2171, %v2167
        %v2224 = vpack.c.b16 %v2172, %v2168
        %v2225 = vpack.c.b16 %v2173, %v2169
        %v2226 = vpack.c.b16 %v2174, %v2170
        %v2227 = vpack.c.b16 %v2179, %v2175
        %v2228 = vpack.c.b16 %v2180, %v2176
        %v2229 = vpack.c.b16 %v2181, %v2177
        %v2230 = vpack.c.b16 %v2182, %v2178
        %v2231 = vpack.c.b16 %v2187, %v2183
        %v2232 = vpack.c.b16 %v2188, %v2184
        %v2233 = vpack.c.b16 %v2189, %v2185
        %v2234 = vpack.c.b16 %v2190, %v2186
        %v2235 = vpack.c.b16 %v2195, %v2191
        %v2236 = vpack.c.b16 %v2196, %v2192
        %v2237 = vpack.c.b16 %v2197, %v2193
        %v2238 = vpack.c.b16 %v2198, %v2194
        %v2239 = vpack.c.b16 %v2203, %v2199
        %v2240 = vpack.c.b16 %v2204, %v2200
        %v2241 = vpack.c.b16 %v2205, %v2201
        %v2242 = vpack.c.b16 %v2206, %v2202
        %v2243 = vpack.c.b16 %v2211, %v2207
        %v2244 = vpack.c.b16 %v2212, %v2208
        %v2245 = vpack.c.b16 %v2213, %v2209
        %v2246 = vpack.c.b16 %v2214, %v2210
        %2279 = vmatprep.subr.bf16.mxu0 %v2244
        %2280 = vmatpush1.bf16.msra.mxu0 %v2243
        %2281 = vmatprep.subr.bf16.mxu0 %v2240
        %2282 = vmatpush1.bf16.msra.mxu0 %v2239
        %2283 = vmatprep.subr.bf16.mxu0 %v2236
        %2284 = vmatpush1.bf16.msra.mxu0 %v2235
        %2285 = vmatprep.subr.bf16.mxu0 %v2232
        %2286 = vmatpush1.bf16.msra.mxu0 %v2231
        %2287 = vmatprep.subr.bf16.mxu0 %v2228
        %2288 = vmatpush1.bf16.msra.mxu0 %v2227
        %2289 = vmatprep.subr.bf16.mxu0 %v2224
        %2290 = vmatpush1.bf16.msra.mxu0 %v2223
        %2291 = vmatprep.subr.bf16.mxu0 %v2220
        %2292 = vmatpush1.bf16.msra.mxu0 %v2219
        %2293 = vmatprep.subr.bf16.mxu0 %v2216
        %2294 = vmatpush1.bf16.msra.mxu0 %v2215
        %2295 = vmatprep.subr.bf16.mxu0 0
        %2296 = vmatpush2.bf16.msra.mxu0 0
        %2297 = vmatprep.subr.bf16.mxu0 0
        %2298 = vmatpush2.bf16.msra.mxu0 0
        %2299 = vmatprep.subr.bf16.mxu0 0
        %2300 = vmatpush2.bf16.msra.mxu0 0
        %2301 = vmatprep.subr.bf16.mxu0 0
        %2302 = vmatpush2.bf16.msra.mxu0 0
        %2303 = vmatprep.subr.bf16.mxu0 0
        %2304 = vmatpush2.bf16.msra.mxu0 0
        %2305 = vmatprep.subr.bf16.mxu0 0
        %2306 = vmatpush2.bf16.msra.mxu0 0
        %2307 = vmatprep.subr.bf16.mxu0 0
        %2308 = vmatpush2.bf16.msra.mxu0 0
        %2309 = vmatprep.subr.bf16.mxu0 0
        %2310 = vmatpush2.bf16.msra.mxu0 0
        %2311 = vmatprep.mubr.bf16.mxu0 0
        %2312 = vmatmul.mubr.bf16.gmra.mxu0 %v2117
        %v2313 = vpop.f32.mrf.mxu0
        %v2314 = vadd.f32 %v2047, %v2313
        %v2315 = vpop.f32.mrf.mxu0
        %v2316 = vadd.f32 %v2049, %v2315
        %v2317 = vpop.f32.mrf.mxu0
        %v2318 = vpop.f32.mrf.mxu0
        %2319 = vdwg.mxu0
        %2320 = vmatprep.subr.bf16.mxu0 %v2246
        %2321 = vmatpush1.bf16.msra.mxu0 %v2245
        %2322 = vmatprep.subr.bf16.mxu0 %v2242
        %2323 = vmatpush1.bf16.msra.mxu0 %v2241
        %2324 = vmatprep.subr.bf16.mxu0 %v2238
        %2325 = vmatpush1.bf16.msra.mxu0 %v2237
        %2326 = vmatprep.subr.bf16.mxu0 %v2234
        %2327 = vmatpush1.bf16.msra.mxu0 %v2233
        %2328 = vmatprep.subr.bf16.mxu0 %v2230
        %2329 = vmatpush1.bf16.msra.mxu0 %v2229
        %2330 = vmatprep.subr.bf16.mxu0 %v2226
        %2331 = vmatpush1.bf16.msra.mxu0 %v2225
        %2332 = vmatprep.subr.bf16.mxu0 %v2222
        %2333 = vmatpush1.bf16.msra.mxu0 %v2221
        %2334 = vmatprep.subr.bf16.mxu0 %v2218
        %2335 = vmatpush1.bf16.msra.mxu0 %v2217
        %2336 = vmatprep.subr.bf16.mxu0 0
        %2337 = vmatpush2.bf16.msra.mxu0 0
        %2338 = vmatprep.subr.bf16.mxu0 0
        %2339 = vmatpush2.bf16.msra.mxu0 0
        %2340 = vmatprep.subr.bf16.mxu0 0
        %2341 = vmatpush2.bf16.msra.mxu0 0
        %2342 = vmatprep.subr.bf16.mxu0 0
        %2343 = vmatpush2.bf16.msra.mxu0 0
        %2344 = vmatprep.subr.bf16.mxu0 0
        %2345 = vmatpush2.bf16.msra.mxu0 0
        %2346 = vmatprep.subr.bf16.mxu0 0
        %2347 = vmatpush2.bf16.msra.mxu0 0
        %2348 = vmatprep.subr.bf16.mxu0 0
        %2349 = vmatpush2.bf16.msra.mxu0 0
        %2350 = vmatprep.subr.bf16.mxu0 0
        %2351 = vmatpush2.bf16.msra.mxu0 0
        %2352 = vmatprep.mubr.bf16.mxu0 0
        %2353 = vmatmul.mubr.bf16.gmra.mxu0 %v2117
        %v2354 = vpop.f32.mrf.mxu0
        %v2355 = vadd.f32 %v2088, %v2354
        %v2356 = vpop.f32.mrf.mxu0
        %v2357 = vadd.f32 %v2090, %v2356
        %v2358 = vpop.f32.mrf.mxu0
        %v2359 = vpop.f32.mrf.mxu0
        %2360 = vdwg.mxu0
        %v2361 = vld [vmem:[%s5] sm:$0xf]
        %v2363 = vlaneseq
        %v2364 = vshrl.u32 %v2363, 7
        %v2365 = vsub.s32 0, %v2364
        %v2366 = vrot.slane %v2361, %v2365
        %v2367 = vlaneseq
        %v2368 = vshrl.u32 %v2367, 7
        %v2369 = vsub.s32 1, %v2368
        %v2370 = vrot.slane %v2361, %v2369
        %v2371 = vlaneseq
        %v2372 = vshrl.u32 %v2371, 7
        %v2373 = vsub.s32 2, %v2372
        %v2374 = vrot.slane %v2361, %v2373
        %v2375 = vlaneseq
        %v2376 = vshrl.u32 %v2375, 7
        %v2377 = vsub.s32 3, %v2376
        %v2378 = vrot.slane %v2361, %v2377
        %v2383 = vadd.f32 %v2314, %v2366
        %v2384 = vadd.f32 %v2316, %v2370
        %v2385 = vadd.f32 %v2355, %v2374
        %v2386 = vadd.f32 %v2357, %v2378
        %v2387 = vmax.f32 %v2383, 0.0
        %v2388 = vmax.f32 %v2384, 0.0
        %v2389 = vmax.f32 %v2385, 0.0
        %v2390 = vmax.f32 %v2386, 0.0
        %v2391 = vpack.c.bf16 %v2387, %v2387
        %v2392 = vpack.c.bf16 %v2388, %v2388
        %v2393 = vpack.c.bf16 %v2389, %v2389
        %v2394 = vpack.c.bf16 %v2390, %v2390
        %v2395 = vld [vmem:[%s6] sm:$0xf]
        %v2396 = vld [vmem:[%s6 + $0x4] sm:$0xf]
        %v2397 = vld [vmem:[%s6 + $0x8] sm:$0xf]
        %v2398 = vld [vmem:[%s6 + $0xc] sm:$0xf]
        %v2399 = vld [vmem:[%s6 + $0x10] sm:$0xf]
        %v2400 = vld [vmem:[%s6 + $0x14] sm:$0xf]
        %v2401 = vld [vmem:[%s6 + $0x18] sm:$0xf]
        %v2402 = vld [vmem:[%s6 + $0x1c] sm:$0xf]
        %v2403 = vld [vmem:[%s6 + $0x20] sm:$0xf]
        %v2404 = vld [vmem:[%s6 + $0x24] sm:$0xf]
        %v2405 = vld [vmem:[%s6 + $0x28] sm:$0xf]
        %v2406 = vld [vmem:[%s6 + $0x2c] sm:$0xf]
        %v2407 = vld [vmem:[%s6 + $0x30] sm:$0xf]
        %v2408 = vld [vmem:[%s6 + $0x34] sm:$0xf]
        %v2409 = vld [vmem:[%s6 + $0x38] sm:$0xf]
        %v2410 = vld [vmem:[%s6 + $0x3c] sm:$0xf]
        %v2411 = vld [vmem:[%s6 + $0x40] sm:$0xf]
        %v2412 = vld [vmem:[%s6 + $0x44] sm:$0xf]
        %v2413 = vld [vmem:[%s6 + $0x48] sm:$0xf]
        %v2414 = vld [vmem:[%s6 + $0x4c] sm:$0xf]
        %v2415 = vld [vmem:[%s6 + $0x50] sm:$0xf]
        %v2416 = vld [vmem:[%s6 + $0x54] sm:$0xf]
        %v2417 = vld [vmem:[%s6 + $0x58] sm:$0xf]
        %v2418 = vld [vmem:[%s6 + $0x5c] sm:$0xf]
        %v2419 = vld [vmem:[%s6 + $0x60] sm:$0xf]
        %v2420 = vld [vmem:[%s6 + $0x64] sm:$0xf]
        %v2421 = vld [vmem:[%s6 + $0x68] sm:$0xf]
        %v2422 = vld [vmem:[%s6 + $0x6c] sm:$0xf]
        %v2423 = vld [vmem:[%s6 + $0x70] sm:$0xf]
        %v2424 = vld [vmem:[%s6 + $0x74] sm:$0xf]
        %v2425 = vld [vmem:[%s6 + $0x78] sm:$0xf]
        %v2426 = vld [vmem:[%s6 + $0x7c] sm:$0xf]
        %v2427 = vld [vmem:[%s6 + $0x80] sm:$0xf]
        %v2428 = vld [vmem:[%s6 + $0x84] sm:$0xf]
        %v2429 = vld [vmem:[%s6 + $0x88] sm:$0xf]
        %v2430 = vld [vmem:[%s6 + $0x8c] sm:$0xf]
        %v2431 = vld [vmem:[%s6 + $0x90] sm:$0xf]
        %v2432 = vld [vmem:[%s6 + $0x94] sm:$0xf]
        %v2433 = vld [vmem:[%s6 + $0x98] sm:$0xf]
        %v2434 = vld [vmem:[%s6 + $0x9c] sm:$0xf]
        %v2435 = vld [vmem:[%s6 + $0xa0] sm:$0xf]
        %v2436 = vld [vmem:[%s6 + $0xa4] sm:$0xf]
        %v2437 = vld [vmem:[%s6 + $0xa8] sm:$0xf]
        %v2438 = vld [vmem:[%s6 + $0xac] sm:$0xf]
        %v2439 = vld [vmem:[%s6 + $0xb0] sm:$0xf]
        %v2440 = vld [vmem:[%s6 + $0xb4] sm:$0xf]
        %v2441 = vld [vmem:[%s6 + $0xb8] sm:$0xf]
        %v2442 = vld [vmem:[%s6 + $0xbc] sm:$0xf]
        %v2443 = vld [vmem:[%s6 + $0xc0] sm:$0xf]
        %v2444 = vld [vmem:[%s6 + $0xc4] sm:$0xf]
        %v2445 = vld [vmem:[%s6 + $0xc8] sm:$0xf]
        %v2446 = vld [vmem:[%s6 + $0xcc] sm:$0xf]
        %v2447 = vld [vmem:[%s6 + $0xd0] sm:$0xf]
        %v2448 = vld [vmem:[%s6 + $0xd4] sm:$0xf]
        %v2449 = vld [vmem:[%s6 + $0xd8] sm:$0xf]
        %v2450 = vld [vmem:[%s6 + $0xdc] sm:$0xf]
        %v2451 = vld [vmem:[%s6 + $0xe0] sm:$0xf]
        %v2452 = vld [vmem:[%s6 + $0xe4] sm:$0xf]
        %v2453 = vld [vmem:[%s6 + $0xe8] sm:$0xf]
        %v2454 = vld [vmem:[%s6 + $0xec] sm:$0xf]
        %v2455 = vld [vmem:[%s6 + $0xf0] sm:$0xf]
        %v2456 = vld [vmem:[%s6 + $0xf4] sm:$0xf]
        %v2457 = vld [vmem:[%s6 + $0xf8] sm:$0xf]
        %v2458 = vld [vmem:[%s6 + $0xfc] sm:$0xf]
        %v2459 = vld [vmem:[%s7] sm:$0x1]
        %v2461 = vlaneseq
        %v2462 = vshrl.u32 %v2461, 7
        %v2463 = vsub.s32 0, %v2462
        %v2464 = vrot.slane %v2459, %v2463
        %v2530 = vunpack.c.l.b16 %v2395
        %v2531 = vunpack.c.l.b16 %v2396
        %v2532 = vunpack.c.l.b16 %v2397
        %v2533 = vunpack.c.l.b16 %v2398
        %v2534 = vunpack.c.l.b16 %v2399
        %v2535 = vunpack.c.l.b16 %v2400
        %v2536 = vunpack.c.l.b16 %v2401
        %v2537 = vunpack.c.l.b16 %v2402
        %v2538 = vunpack.c.l.b16 %v2403
        %v2539 = vunpack.c.l.b16 %v2404
        %v2540 = vunpack.c.l.b16 %v2405
        %v2541 = vunpack.c.l.b16 %v2406
        %v2542 = vunpack.c.l.b16 %v2407
        %v2543 = vunpack.c.l.b16 %v2408
        %v2544 = vunpack.c.l.b16 %v2409
        %v2545 = vunpack.c.l.b16 %v2410
        %v2546 = vunpack.c.l.b16 %v2411
        %v2547 = vunpack.c.l.b16 %v2412
        %v2548 = vunpack.c.l.b16 %v2413
        %v2549 = vunpack.c.l.b16 %v2414
        %v2550 = vunpack.c.l.b16 %v2415
        %v2551 = vunpack.c.l.b16 %v2416
        %v2552 = vunpack.c.l.b16 %v2417
        %v2553 = vunpack.c.l.b16 %v2418
        %v2554 = vunpack.c.l.b16 %v2419
        %v2555 = vunpack.c.l.b16 %v2420
        %v2556 = vunpack.c.l.b16 %v2421
        %v2557 = vunpack.c.l.b16 %v2422
        %v2558 = vunpack.c.l.b16 %v2423
        %v2559 = vunpack.c.l.b16 %v2424
        %v2560 = vunpack.c.l.b16 %v2425
        %v2561 = vunpack.c.l.b16 %v2426
        %v2562 = vunpack.c.l.b16 %v2427
        %v2563 = vunpack.c.l.b16 %v2428
        %v2564 = vunpack.c.l.b16 %v2429
        %v2565 = vunpack.c.l.b16 %v2430
        %v2566 = vunpack.c.l.b16 %v2431
        %v2567 = vunpack.c.l.b16 %v2432
        %v2568 = vunpack.c.l.b16 %v2433
        %v2569 = vunpack.c.l.b16 %v2434
        %v2570 = vunpack.c.l.b16 %v2435
        %v2571 = vunpack.c.l.b16 %v2436
        %v2572 = vunpack.c.l.b16 %v2437
        %v2573 = vunpack.c.l.b16 %v2438
        %v2574 = vunpack.c.l.b16 %v2439
        %v2575 = vunpack.c.l.b16 %v2440
        %v2576 = vunpack.c.l.b16 %v2441
        %v2577 = vunpack.c.l.b16 %v2442
        %v2578 = vunpack.c.l.b16 %v2443
        %v2579 = vunpack.c.l.b16 %v2444
        %v2580 = vunpack.c.l.b16 %v2445
        %v2581 = vunpack.c.l.b16 %v2446
        %v2582 = vunpack.c.l.b16 %v2447
        %v2583 = vunpack.c.l.b16 %v2448
        %v2584 = vunpack.c.l.b16 %v2449
        %v2585 = vunpack.c.l.b16 %v2450
        %v2586 = vunpack.c.l.b16 %v2451
        %v2587 = vunpack.c.l.b16 %v2452
        %v2588 = vunpack.c.l.b16 %v2453
        %v2589 = vunpack.c.l.b16 %v2454
        %v2590 = vunpack.c.l.b16 %v2455
        %v2591 = vunpack.c.l.b16 %v2456
        %v2592 = vunpack.c.l.b16 %v2457
        %v2593 = vunpack.c.l.b16 %v2458
        %v2594 = vpack.c.b16 %v2531, %v2530
        %v2595 = vpack.c.b16 %v2533, %v2532
        %v2596 = vpack.c.b16 %v2535, %v2534
        %v2597 = vpack.c.b16 %v2537, %v2536
        %v2598 = vpack.c.b16 %v2539, %v2538
        %v2599 = vpack.c.b16 %v2541, %v2540
        %v2600 = vpack.c.b16 %v2543, %v2542
        %v2601 = vpack.c.b16 %v2545, %v2544
        %v2602 = vpack.c.b16 %v2547, %v2546
        %v2603 = vpack.c.b16 %v2549, %v2548
        %v2604 = vpack.c.b16 %v2551, %v2550
        %v2605 = vpack.c.b16 %v2553, %v2552
        %v2606 = vpack.c.b16 %v2555, %v2554
        %v2607 = vpack.c.b16 %v2557, %v2556
        %v2608 = vpack.c.b16 %v2559, %v2558
        %v2609 = vpack.c.b16 %v2561, %v2560
        %v2610 = vpack.c.b16 %v2563, %v2562
        %v2611 = vpack.c.b16 %v2565, %v2564
        %v2612 = vpack.c.b16 %v2567, %v2566
        %v2613 = vpack.c.b16 %v2569, %v2568
        %v2614 = vpack.c.b16 %v2571, %v2570
        %v2615 = vpack.c.b16 %v2573, %v2572
        %v2616 = vpack.c.b16 %v2575, %v2574
        %v2617 = vpack.c.b16 %v2577, %v2576
        %v2618 = vpack.c.b16 %v2579, %v2578
        %v2619 = vpack.c.b16 %v2581, %v2580
        %v2620 = vpack.c.b16 %v2583, %v2582
        %v2621 = vpack.c.b16 %v2585, %v2584
        %v2622 = vpack.c.b16 %v2587, %v2586
        %v2623 = vpack.c.b16 %v2589, %v2588
        %v2624 = vpack.c.b16 %v2591, %v2590
        %v2625 = vpack.c.b16 %v2593, %v2592
        %2658 = vmatprep.subr.bf16.mxu0 0
        %2659 = vmatpush1.bf16.msra.mxu0 %v2601
        %2660 = vmatprep.subr.bf16.mxu0 0
        %2661 = vmatpush1.bf16.msra.mxu0 %v2600
        %2662 = vmatprep.subr.bf16.mxu0 0
        %2663 = vmatpush1.bf16.msra.mxu0 %v2599
        %2664 = vmatprep.subr.bf16.mxu0 0
        %2665 = vmatpush1.bf16.msra.mxu0 %v2598
        %2666 = vmatprep.subr.bf16.mxu0 0
        %2667 = vmatpush1.bf16.msra.mxu0 %v2597
        %2668 = vmatprep.subr.bf16.mxu0 0
        %2669 = vmatpush1.bf16.msra.mxu0 %v2596
        %2670 = vmatprep.subr.bf16.mxu0 0
        %2671 = vmatpush1.bf16.msra.mxu0 %v2595
        %2672 = vmatprep.subr.bf16.mxu0 0
        %2673 = vmatpush1.bf16.msra.mxu0 %v2594
        %2674 = vmatprep.subr.bf16.mxu0 0
        %2675 = vmatpush2.bf16.msra.mxu0 %v2609
        %2676 = vmatprep.subr.bf16.mxu0 0
        %2677 = vmatpush2.bf16.msra.mxu0 %v2608
        %2678 = vmatprep.subr.bf16.mxu0 0
        %2679 = vmatpush2.bf16.msra.mxu0 %v2607
        %2680 = vmatprep.subr.bf16.mxu0 0
        %2681 = vmatpush2.bf16.msra.mxu0 %v2606
        %2682 = vmatprep.subr.bf16.mxu0 0
        %2683 = vmatpush2.bf16.msra.mxu0 %v2605
        %2684 = vmatprep.subr.bf16.mxu0 0
        %2685 = vmatpush2.bf16.msra.mxu0 %v2604
        %2686 = vmatprep.subr.bf16.mxu0 0
        %2687 = vmatpush2.bf16.msra.mxu0 %v2603
        %2688 = vmatprep.subr.bf16.mxu0 0
        %2689 = vmatpush2.bf16.msra.mxu0 %v2602
        %2690 = vmatprep.mubr.bf16.mxu0 %v2392
        %2691 = vmatmul.mubr.bf16.gmra.mxu0 %v2391
        %v2692 = vpop.f32.mrf.mxu0
        %v2693 = vadd.f32 %v2464, %v2692
        %v2694 = vpop.f32.mrf.mxu0
        %v2695 = vpop.f32.mrf.mxu0
        %v2696 = vpop.f32.mrf.mxu0
        %2697 = vdwg.mxu0
        %2698 = vmatprep.subr.bf16.mxu0 0
        %2699 = vmatpush1.bf16.msra.mxu0 %v2617
        %2700 = vmatprep.subr.bf16.mxu0 0
        %2701 = vmatpush1.bf16.msra.mxu0 %v2616
        %2702 = vmatprep.subr.bf16.mxu0 0
        %2703 = vmatpush1.bf16.msra.mxu0 %v2615
        %2704 = vmatprep.subr.bf16.mxu0 0
        %2705 = vmatpush1.bf16.msra.mxu0 %v2614
        %2706 = vmatprep.subr.bf16.mxu0 0
        %2707 = vmatpush1.bf16.msra.mxu0 %v2613
        %2708 = vmatprep.subr.bf16.mxu0 0
        %2709 = vmatpush1.bf16.msra.mxu0 %v2612
        %2710 = vmatprep.subr.bf16.mxu0 0
        %2711 = vmatpush1.bf16.msra.mxu0 %v2611
        %2712 = vmatprep.subr.bf16.mxu0 0
        %2713 = vmatpush1.bf16.msra.mxu0 %v2610
        %2714 = vmatprep.subr.bf16.mxu0 0
        %2715 = vmatpush2.bf16.msra.mxu0 %v2625
        %2716 = vmatprep.subr.bf16.mxu0 0
        %2717 = vmatpush2.bf16.msra.mxu0 %v2624
        %2718 = vmatprep.subr.bf16.mxu0 0
        %2719 = vmatpush2.bf16.msra.mxu0 %v2623
        %2720 = vmatprep.subr.bf16.mxu0 0
        %2721 = vmatpush2.bf16.msra.mxu0 %v2622
        %2722 = vmatprep.subr.bf16.mxu0 0
        %2723 = vmatpush2.bf16.msra.mxu0 %v2621
        %2724 = vmatprep.subr.bf16.mxu0 0
        %2725 = vmatpush2.bf16.msra.mxu0 %v2620
        %2726 = vmatprep.subr.bf16.mxu0 0
        %2727 = vmatpush2.bf16.msra.mxu0 %v2619
        %2728 = vmatprep.subr.bf16.mxu0 0
        %2729 = vmatpush2.bf16.msra.mxu0 %v2618
        %2730 = vmatprep.mubr.bf16.mxu0 %v2394
        %2731 = vmatmul.mubr.bf16.gmra.mxu0 %v2393
        %v2732 = vpop.f32.mrf.mxu0
        %v2733 = vadd.f32 %v2693, %v2732
        %v2734 = vpop.f32.mrf.mxu0
        %v2735 = vpop.f32.mrf.mxu0
        %v2736 = vpop.f32.mrf.mxu0
        %2737 = vdwg.mxu0
        %v2738 = vmax.f32 %v2733, 0.0
        %v2739 = vld [vmem:[%s8] sm:$0x1]
        %v2741 = vlaneseq
        %v2742 = vshrl.u32 %v2741, 7
        %v2743 = vsub.s32 0, %v2742
        %v2744 = vrot.slane %v2739, %v2743
        %v2746 = vmul.f32 %v2738, %v2744
        %vm2747 = vcmask 523264
        %v2748 = vsel %vm2747, %v2746, 0.0
        %2749 = vadd.xlane.f32.xlu0 %v2748
        %v2750 = vpop.xlane.xlu0 %2749
        %v2751 = vld [vmem:[#allocation2] sm:$0x1]
        %v2753 = vlaneseq
        %v2754 = vshrl.u32 %v2753, 7
        %v2755 = vsub.s32 0, %v2754
        %v2756 = vrot.slane %v2751, %v2755
        %v2758 = vadd.f32 %v2750, %v2756
        %v2759 = vxor.u32 %v2758, 2147483648
        %v2760 = vmul.f32 %v2759, 1.442695
        %v2761 = vpow.pop %v2760
        %v2762 = vadd.f32 %v2761, 1.0
        %v2763 = vrcp.pop %v2762
        %v2764 = vmul.f32 1.0, %v2763
        %vm2765 = vcmask 7168
        %2766 = vst.msk [vmem:[%s430] sm:$0xff] %vm2765, %v2764
        %p2767 = scmp.lt.s32.totalorder %s25, 1
        %s2768 = scalar_select %p2767, %s25, 1
        %s2769 = smul.addr %s2768, 8
        %s2770 = scalar_lea.vmem %s10, %s2769
        // Predicated region
        $region73: #{tpu_custom_call.1} parent=59 // pred_check
          %p2771 = pneg %p263
        $region74: #{tpu_custom_call.1} parent=59 // pred_check_branch
          %2773 = sbr.rel (%p2771) target = $region76
        $region75: #{tpu_custom_call.1} parent=59 // pred_region
          _
        $region76: #{tpu_custom_call.1} parent=59 // pred_fallthru
          _
      $region60: #{tpu_custom_call.1} parent=5 // pred_fallthru
        _
      %p2774 = scmp.le.s32.totalorder 2, %s20
      // Predicated region
      $region77: #{tpu_custom_call.1} parent=5 // pred_check
        %p2775 = pneg %p2774
      $region78: #{tpu_custom_call.1} parent=5 // pred_check_branch
        %2777 = sbr.rel (%p2775) target = $region80
      $region79: #{tpu_custom_call.1} parent=5 // pred_region
        %s2778 = ssub.s32 %s20, 2
        // Predicated region
        $region81: #{tpu_custom_call.1} parent=79 // pred_check
          %p2779 = pneg %p269
        $region82: #{tpu_custom_call.1} parent=79 // pred_check_branch
          %2781 = sbr.rel (%p2779) target = $region84
        $region83: #{tpu_custom_call.1} parent=79 // pred_region
          %p2782 = scmp.lt.s32.totalorder %s26, 1
          %s2783 = scalar_select %p2782, %s26, 1
          %s2784 = smul.addr %s2783, 8
          %s2785 = scalar_lea.vmem %s10, %s2784
        $region84: #{tpu_custom_call.1} parent=79 // pred_fallthru
          _
      $region80: #{tpu_custom_call.1} parent=5 // pred_fallthru
        _
    $region6: #{tpu_custom_call.1} parent=1 // loop_footer
      %s24 = sadd.s32 1, %s20
    $region7: #{tpu_custom_call.1} parent=1 // loop_footer_branch
      %19 = sbr.rel target = $region3
    $region8: #{tpu_custom_call.1} parent=1 // loop_exit
      _
    %2786 = vsyncpa [#allocation4], 1
    %s2787 = scalar_lea.sflag [#allocation4], 1
    %2788 = vsyncpa %s2787, 1
    %2789 = vsyncpa [#allocation6], 1

</llo_original>
